<compile_context>
chip_gen: v5e
topology: v5e:2x2
jax: 0.10.0
libtpu: 0.0.40
codegen_flags: <defaults>
</compile_context>

<pallas_src>
import functools
import math

import jax
import jax.numpy as jnp
from jax.experimental import pallas as pl
from jax.experimental.pallas import tpu as pltpu


# ---------------------------------------------------------------------------
# Fused kernel: QKV projection + causal flash attention + output projection
# ---------------------------------------------------------------------------
def mha_flash_kernel(xq_ref, xkv_ref, wq_ref, wkv_ref, wp_ref, bp_ref, o_ref,
                     q_scr, m_scr, l_scr, acc_scr, *, num_heads, head_size):
    """One (batch, q-tile, kv-tile) grid step."""
    H, hs = num_heads, head_size
    tq = xq_ref.shape[1]
    tk = xkv_ref.shape[1]
    qi = pl.program_id(1)
    ki = pl.program_id(2)
    nk = pl.num_programs(2)
    cdt = q_scr.dtype            # MXU operand dtype (bf16 when inputs are bf16)

    # ---- first KV step: project Q for all heads (one wide matmul) + init state
    @pl.when(ki == 0)
    def _init():
        xq = xq_ref[0]                                                # (tq, C)
        q = jnp.dot(xq, wq_ref[...], preferred_element_type=jnp.float32)
        q_scr[...] = (q * (1.0 / math.sqrt(hs))).astype(cdt)          # (tq, H*hs)
        m_scr[...] = jnp.full(m_scr.shape, -jnp.inf, jnp.float32)
        l_scr[...] = jnp.zeros(l_scr.shape, jnp.float32)
        acc_scr[...] = jnp.zeros(acc_scr.shape, jnp.float32)

    q_first = qi * tq
    kv_first = ki * tk

    # ---- online-softmax update; skip KV tiles entirely above the diagonal
    @pl.when(kv_first <= q_first + (tq - 1))
    def _step():
        xkv = xkv_ref[0]                                              # (tk, C)
        kv = jnp.dot(xkv, wkv_ref[...],
                     preferred_element_type=jnp.float32).astype(cdt)  # (tk, 2*H*hs)

        # Causal mask built once per KV step, shared by every head.
        # TODO(synk): specialize fully-visible tiles to drop the select entirely.
        rows = q_first + jax.lax.broadcasted_iota(jnp.int32, (tq, tk), 0)
        cols = kv_first + jax.lax.broadcasted_iota(jnp.int32, (tq, tk), 1)
        causal = cols <= rows

        q_all = q_scr[...]                                            # (tq, H*hs)
        for h in range(H):                                            # static unroll
            qh = q_all[:, h * hs:(h + 1) * hs]                        # (tq, hs)
            kh = kv[:, h * hs:(h + 1) * hs]                           # (tk, hs)
            vh = kv[:, (H + h) * hs:(H + h + 1) * hs]                 # (tk, hs)

            # scores without materializing k.T: contract head dims directly
            s = jax.lax.dot_general(qh, kh, (((1,), (1,)), ((), ())),
                                    preferred_element_type=jnp.float32)  # (tq, tk)
            s = jnp.where(causal, s, -jnp.inf)

            m_prev = m_scr[h]                                          # (tq, 1)
            m_new = jnp.maximum(m_prev, jnp.max(s, axis=-1, keepdims=True))
            alpha = jnp.exp(m_prev - m_new)
            p = jnp.exp(s - m_new)
            l_scr[h] = alpha * l_scr[h] + jnp.sum(p, axis=-1, keepdims=True)
            acc_scr[h] = alpha * acc_scr[h] + jnp.dot(
                p.astype(cdt), vh, preferred_element_type=jnp.float32)
            m_scr[h] = m_new

    # ---- last KV step: normalize, fused output projection (+bias), write result
    @pl.when(ki == nk - 1)
    def _epilogue():
        wp = wp_ref[...]                                               # (H*hs, C)
        y = jnp.zeros((tq, wp.shape[-1]), jnp.float32)
        for h in range(H):
            attn_h = acc_scr[h] * pl.reciprocal(l_scr[h], approx=True)  # (tq, hs)
            y = y + jnp.dot(attn_h.astype(cdt), wp[h * hs:(h + 1) * hs, :],
                            preferred_element_type=jnp.float32)
        y = y + bp_ref[...]                                            # (1, C) bias
        o_ref[0] = y.astype(o_ref.dtype)


# ---------------------------------------------------------------------------
# Wrapper
# ---------------------------------------------------------------------------
def _pick_block(T, target):
    """Largest multiple-of-8 divisor of T that is <= target (or T itself)."""
    if T <= target:
        return T
    start = (min(target, T) // 8) * 8
    for cand in range(start, 7, -8):
        if T % cand == 0:
            return cand
    return T


def multi_head_attention(x, wq, wk, wv, w_proj, b_proj, *,
                         block_q=256, block_k=512, vmem_limit_bytes=None):
    """Fused causal multi-head attention forward.

    x: (B, T, C); wq/wk/wv: (H, C, hs) per-head weights (no bias);
    w_proj: (H*hs, C) (stored transposed vs nn.Linear); b_proj: (C,).

    Defaults (block_q=256, block_k=512) target v7x's 64 MiB VMEM; on v6e/v5e
    (128 MiB) block_q=512 / block_k=1024 amortize per-step overhead better.
    """
    B, T, C = x.shape
    H, C2, hs = wq.shape
    assert C2 == C and w_proj.shape == (H * hs, C) and b_proj.shape == (C,)

    tq = _pick_block(T, block_q)
    tk = _pick_block(T, block_k)
    nq, nk = T // tq, T // tk

    # Fuse per-head weights into lane-dense slabs:
    #   wq_f : (C, H*hs)   head-major columns
    #   wkv_f: (C, 2*H*hs) [K for all heads | V for all heads]
    wq_f = jnp.transpose(wq, (1, 0, 2)).reshape(C, H * hs)
    wk_f = jnp.transpose(wk, (1, 0, 2)).reshape(C, H * hs)
    wv_f = jnp.transpose(wv, (1, 0, 2)).reshape(C, H * hs)
    wkv_f = jnp.concatenate([wk_f, wv_f], axis=-1)
    b2d = b_proj.reshape(1, C)

    if vmem_limit_bytes is None:
        itemsize = jnp.dtype(x.dtype).itemsize
        est = (2 * (tq * C + tk * C + tq * C) * itemsize           # dbl-buffered tiles
               + (3 * C * H * hs + H * hs * C + C) * itemsize      # resident weights
               + tq * H * hs * itemsize                            # Q scratch
               + (2 * tq + tq * hs) * H * 4)                       # m/l/acc (f32)
        vmem_limit_bytes = int(min(112 * 2**20, max(32 * 2**20, 6 * est)))

    kernel = functools.partial(mha_flash_kernel, num_heads=H, head_size=hs)

    return pl.pallas_call(
        kernel,
        out_shape=jax.ShapeDtypeStruct((B, T, C), x.dtype),
        grid_spec=pltpu.PrefetchScalarGridSpec(
            num_scalar_prefetch=0,
            grid=(B, nq, nk),
            in_specs=[
                pl.BlockSpec((1, tq, C),      lambda b, qi, ki: (b, qi, 0)),  # x (q side)
                pl.BlockSpec((1, tk, C),      lambda b, qi, ki: (b, ki, 0)),  # x (kv side)
                pl.BlockSpec((C, H * hs),     lambda b, qi, ki: (0, 0)),      # wq fused
                pl.BlockSpec((C, 2 * H * hs), lambda b, qi, ki: (0, 0)),      # wk|wv fused
                pl.BlockSpec((H * hs, C),     lambda b, qi, ki: (0, 0)),      # w_proj
                pl.BlockSpec((1, C),          lambda b, qi, ki: (0, 0)),      # b_proj
            ],
            out_specs=pl.BlockSpec((1, tq, C), lambda b, qi, ki: (b, qi, 0)),
            scratch_shapes=[
                pltpu.VMEM((tq, H * hs), x.dtype),      # Q, all heads, lane-dense
                pltpu.VMEM((H, tq, 1), jnp.float32),    # running max
                pltpu.VMEM((H, tq, 1), jnp.float32),    # running sum
                pltpu.VMEM((H, tq, hs), jnp.float32),   # output accumulator
            ],
        ),
        compiler_params=pltpu.CompilerParams(
            dimension_semantics=("parallel", "parallel", "arbitrary"),
            vmem_limit_bytes=vmem_limit_bytes),
    )(x, x, wq_f, wkv_f, w_proj, b2d)


# ---------------------------------------------------------------------------
# Pure-JAX reference (mirrors the PyTorch forward, eval mode)
# ---------------------------------------------------------------------------
def reference(x, wq, wk, wv, w_proj, b_proj):
    B, T, C = x.shape
    H, _, hs = wq.shape
    q = jnp.einsum("btc,hcd->bhtd", x, wq)
    k = jnp.einsum("btc,hcd->bhtd", x, wk)
    v = jnp.einsum("btc,hcd->bhtd", x, wv)
    s = jnp.einsum("bhtd,bhsd->bhts", q, k) / math.sqrt(hs)
    mask = jnp.tril(jnp.ones((T, T), dtype=bool))
    s = jnp.where(mask, s, -jnp.inf)
    p = jax.nn.softmax(s, axis=-1)
    o = jnp.einsum("bhts,bhsd->bhtd", p, v)
    cat = jnp.transpose(o, (0, 2, 1, 3)).reshape(B, T, H * hs)
    return cat @ w_proj + b_proj


if __name__ == "__main__":
    # small, module-consistent shapes
    B, T = 2, 8                       # batch, block_size (seq len)
    n_embd = 32
    num_heads = 4
    head_size = n_embd // num_heads   # 8
    dropout = 0.0                     # eval mode

    key = jax.random.PRNGKey(0)
    kx, kq, kk, kv, kw, kb = jax.random.split(key, 6)

    x = jax.random.normal(kx, (B, T, n_embd), dtype=jnp.float32)
    wq = jax.random.normal(kq, (num_heads, n_embd, head_size), jnp.float32) * 0.1
    wk = jax.random.normal(kk, (num_heads, n_embd, head_size), jnp.float32) * 0.1
    wv = jax.random.normal(kv, (num_heads, n_embd, head_size), jnp.float32) * 0.1
    w_proj = jax.random.normal(kw, (num_heads * head_size, n_embd), jnp.float32) * 0.1
    b_proj = jax.random.normal(kb, (n_embd,), jnp.float32) * 0.1

    ref = reference(x, wq, wk, wv, w_proj, b_proj)

    # f32 path
    out = multi_head_attention(x, wq, wk, wv, w_proj, b_proj)
    out = jax.block_until_ready(out)
    assert out.shape == (B, T, n_embd)
    assert jnp.allclose(out, ref, atol=2e-3, rtol=2e-3), "f32 mismatch vs reference"

    # bf16-operand path (native MXU dtype on v5e/v6e/v7x); softmax/accum stay f32
    bf = jnp.bfloat16
    out_bf16 = multi_head_attention(x.astype(bf), wq.astype(bf), wk.astype(bf),
                                    wv.astype(bf), w_proj.astype(bf),
                                    b_proj.astype(bf))
    out_bf16 = jax.block_until_ready(out_bf16)
    assert jnp.allclose(out_bf16.astype(jnp.float32), ref, atol=1e-1, rtol=1e-1), \
        "bf16 mismatch vs reference"

    print("KERNEL_OK")
</pallas_src>

<mosaic_0001>
module attributes {stable_mosaic.version = 11 : i64} {
  func.func @mha_flash_kernel(%arg0: i32, %arg1: i32, %arg2: i32, %arg3: memref<1x8x32xf32, #tpu.memory_space<vmem>>, %arg4: memref<1x8x32xf32, #tpu.memory_space<vmem>>, %arg5: memref<32x32xf32, #tpu.memory_space<vmem>>, %arg6: memref<32x64xf32, #tpu.memory_space<vmem>>, %arg7: memref<32x32xf32, #tpu.memory_space<vmem>>, %arg8: memref<1x32xf32, #tpu.memory_space<vmem>>, %arg9: memref<1x8x32xf32, #tpu.memory_space<vmem>>, %arg10: memref<8x32xf32, #tpu.memory_space<vmem>>, %arg11: memref<4x8x1xf32, #tpu.memory_space<vmem>>, %arg12: memref<4x8x1xf32, #tpu.memory_space<vmem>>, %arg13: memref<4x8x8xf32, #tpu.memory_space<vmem>>) attributes {dimension_semantics = [#tpu.dimension_semantics<parallel>, #tpu.dimension_semantics<parallel>, #tpu.dimension_semantics<arbitrary>], iteration_bounds = array<i64: 2, 1, 1>, scalar_prefetch = 0 : i64, scratch_operands = 4 : i64, tpu.core_type = #tpu.core_type<tc>, window_params = [{transform_indices = @transform_0, window_bounds = array<i64: 1, 8, 32>}, {transform_indices = @transform_1, window_bounds = array<i64: 1, 8, 32>}, {pipeline_mode = #tpu.pipeline_mode<synchronous>, transform_indices = @transform_2, window_bounds = array<i64: 32, 32>}, {pipeline_mode = #tpu.pipeline_mode<synchronous>, transform_indices = @transform_3, window_bounds = array<i64: 32, 64>}, {pipeline_mode = #tpu.pipeline_mode<synchronous>, transform_indices = @transform_4, window_bounds = array<i64: 32, 32>}, {pipeline_mode = #tpu.pipeline_mode<synchronous>, transform_indices = @transform_5, window_bounds = array<i64: 1, 32>}, {transform_indices = @transform_6, window_bounds = array<i64: 1, 8, 32>}]} {
    %c0_i32 = arith.constant 0 : i32
    %0 = arith.cmpi eq, %arg2, %c0_i32 : i32
    %1 = arith.extui %0 : i1 to i32
    %c0_i32_0 = arith.constant 0 : i32
    %2 = arith.cmpi ne, %1, %c0_i32_0 : i32
    scf.if %2 {
      %c0 = arith.constant 0 : index
      %c0_5 = arith.constant 0 : index
      %c0_6 = arith.constant 0 : index
      %12 = vector.load %arg3[%c0, %c0_5, %c0_6] : memref<1x8x32xf32, #tpu.memory_space<vmem>>, vector<1x8x32xf32>
      %13 = vector.shape_cast %12 : vector<1x8x32xf32> to vector<8x32xf32>
      %c0_7 = arith.constant 0 : index
      %c0_8 = arith.constant 0 : index
      %14 = vector.load %arg5[%c0_7, %c0_8] : memref<32x32xf32, #tpu.memory_space<vmem>>, vector<32x32xf32>
      %cst = arith.constant dense<0.000000e+00> : vector<8x32xf32>
      %15 = tpu.matmul %13, %14, %cst {dimension_numbers = #tpu.dot_dimension_numbers<[1], [0], [0], [1], [0, 0, 1, 1], [], []>} : vector<8x32xf32>, vector<32x32xf32>, vector<8x32xf32> -> vector<8x32xf32>
      %cst_9 = arith.constant 0.353553385 : f32
      %16 = vector.broadcast %cst_9 : f32 to vector<8x32xf32>
      %17 = arith.mulf %15, %16 : vector<8x32xf32>
      %c0_10 = arith.constant 0 : index
      %c0_11 = arith.constant 0 : index
      %18 = vector.load %arg10[%c0_10, %c0_11] : memref<8x32xf32, #tpu.memory_space<vmem>>, vector<8x32xf32>
      tpu.vector_store %arg10[%c0_10, %c0_11], %17 {strides = array<i32>} : memref<8x32xf32, #tpu.memory_space<vmem>>, vector<8x32xf32>,
      %cst_12 = arith.constant 0xFF800000 : f32
      %19 = vector.broadcast %cst_12 : f32 to vector<4x8x1xf32>
      %c0_13 = arith.constant 0 : index
      %c0_14 = arith.constant 0 : index
      %c0_15 = arith.constant 0 : index
      %20 = vector.load %arg11[%c0_13, %c0_14, %c0_15] : memref<4x8x1xf32, #tpu.memory_space<vmem>>, vector<4x8x1xf32>
      tpu.vector_store %arg11[%c0_13, %c0_14, %c0_15], %19 {strides = array<i32>} : memref<4x8x1xf32, #tpu.memory_space<vmem>>, vector<4x8x1xf32>,
      %cst_16 = arith.constant 0.000000e+00 : f32
      %21 = vector.broadcast %cst_16 : f32 to vector<4x8x1xf32>
      %c0_17 = arith.constant 0 : index
      %c0_18 = arith.constant 0 : index
      %c0_19 = arith.constant 0 : index
      %22 = vector.load %arg12[%c0_17, %c0_18, %c0_19] : memref<4x8x1xf32, #tpu.memory_space<vmem>>, vector<4x8x1xf32>
      tpu.vector_store %arg12[%c0_17, %c0_18, %c0_19], %21 {strides = array<i32>} : memref<4x8x1xf32, #tpu.memory_space<vmem>>, vector<4x8x1xf32>,
      %cst_20 = arith.constant 0.000000e+00 : f32
      %23 = vector.broadcast %cst_20 : f32 to vector<4x8x8xf32>
      %c0_21 = arith.constant 0 : index
      %c0_22 = arith.constant 0 : index
      %c0_23 = arith.constant 0 : index
      %24 = vector.load %arg13[%c0_21, %c0_22, %c0_23] : memref<4x8x8xf32, #tpu.memory_space<vmem>>, vector<4x8x8xf32>
      tpu.vector_store %arg13[%c0_21, %c0_22, %c0_23], %23 {strides = array<i32>} : memref<4x8x8xf32, #tpu.memory_space<vmem>>, vector<4x8x8xf32>,
    } else {
    }
    %c8_i32 = arith.constant 8 : i32
    %3 = arith.muli %arg1, %c8_i32 : i32
    %c8_i32_1 = arith.constant 8 : i32
    %4 = arith.muli %arg2, %c8_i32_1 : i32
    %c7_i32 = arith.constant 7 : i32
    %5 = arith.addi %3, %c7_i32 : i32
    %6 = arith.cmpi sle, %4, %5 : i32
    %7 = arith.extui %6 : i1 to i32
    %c0_i32_2 = arith.constant 0 : i32
    %8 = arith.cmpi ne, %7, %c0_i32_2 : i32
    scf.if %8 {
      %c0 = arith.constant 0 : index
      %c0_5 = arith.constant 0 : index
      %c0_6 = arith.constant 0 : index
      %12 = vector.load %arg4[%c0, %c0_5, %c0_6] : memref<1x8x32xf32, #tpu.memory_space<vmem>>, vector<1x8x32xf32>
      %13 = vector.shape_cast %12 : vector<1x8x32xf32> to vector<8x32xf32>
      %c0_7 = arith.constant 0 : index
      %c0_8 = arith.constant 0 : index
      %14 = vector.load %arg6[%c0_7, %c0_8] : memref<32x64xf32, #tpu.memory_space<vmem>>, vector<32x64xf32>
      %cst = arith.constant dense<0.000000e+00> : vector<8x64xf32>
      %15 = tpu.matmul %13, %14, %cst {dimension_numbers = #tpu.dot_dimension_numbers<[1], [0], [0], [1], [0, 0, 1, 1], [], []>} : vector<8x32xf32>, vector<32x64xf32>, vector<8x64xf32> -> vector<8x64xf32>
      %16 = tpu.iota {dimensions = array<i32: 0>} : vector<8x8xi32>
      %17 = vector.broadcast %3 : i32 to vector<8x8xi32>
      %18 = arith.addi %17, %16 : vector<8x8xi32>
      %19 = tpu.iota {dimensions = array<i32: 1>} : vector<8x8xi32>
      %20 = vector.broadcast %4 : i32 to vector<8x8xi32>
      %21 = arith.addi %20, %19 : vector<8x8xi32>
      %22 = arith.cmpi sle, %21, %18 : vector<8x8xi32>
      %c0_9 = arith.constant 0 : index
      %c0_10 = arith.constant 0 : index
      %23 = vector.load %arg10[%c0_9, %c0_10] : memref<8x32xf32, #tpu.memory_space<vmem>>, vector<8x32xf32>
      %24 = vector.extract_strided_slice %23 {offsets = [0, 0], sizes = [8, 8], strides = [1, 1]} : vector<8x32xf32> to vector<8x8xf32>
      %25 = vector.extract_strided_slice %15 {offsets = [0, 0], sizes = [8, 8], strides = [1, 1]} : vector<8x64xf32> to vector<8x8xf32>
      %26 = vector.extract_strided_slice %15 {offsets = [0, 32], sizes = [8, 8], strides = [1, 1]} : vector<8x64xf32> to vector<8x8xf32>
      %cst_11 = arith.constant dense<0.000000e+00> : vector<8x8xf32>
      %27 = tpu.matmul %24, %25, %cst_11 {dimension_numbers = #tpu.dot_dimension_numbers<[1], [1], [0], [0], [0, 0, 1, 0], [], []>} : vector<8x8xf32>, vector<8x8xf32>, vector<8x8xf32> -> vector<8x8xf32>
      %cst_12 = arith.constant 0xFF800000 : f32
      %28 = vector.broadcast %cst_12 : f32 to vector<8x8xf32>
      %29 = arith.select %22, %27, %28 : vector<8x8xi1>, vector<8x8xf32>
      %c0_13 = arith.constant 0 : index
      %c0_14 = arith.constant 0 : index
      %c0_15 = arith.constant 0 : index
      %30 = vector.load %arg11[%c0_13, %c0_14, %c0_15] : memref<4x8x1xf32, #tpu.memory_space<vmem>>, vector<1x8x1xf32>
      %31 = vector.shape_cast %30 : vector<1x8x1xf32> to vector<8x1xf32>
      %cst_16 = arith.constant dense<0xFF800000> : vector<8xf32>
      %32 = vector.multi_reduction <maximumf>, %29, %cst_16 [1] : vector<8x8xf32> to vector<8xf32>
      %33 = vector.shape_cast %32 : vector<8xf32> to vector<8x1xf32>
      %34 = arith.maximumf %31, %33 : vector<8x1xf32>
      %35 = arith.subf %31, %34 : vector<8x1xf32>
      %36 = math.exp %35 : vector<8x1xf32>
      %37 = vector.broadcast %34 : vector<8x1xf32> to vector<8x8xf32>
      %38 = arith.subf %29, %37 : vector<8x8xf32>
      %39 = math.exp %38 : vector<8x8xf32>
      %c0_17 = arith.constant 0 : index
      %c0_18 = arith.constant 0 : index
      %c0_19 = arith.constant 0 : index
      %40 = vector.load %arg12[%c0_17, %c0_18, %c0_19] : memref<4x8x1xf32, #tpu.memory_space<vmem>>, vector<1x8x1xf32>
      %41 = vector.shape_cast %40 : vector<1x8x1xf32> to vector<8x1xf32>
      %42 = arith.mulf %36, %41 : vector<8x1xf32>
      %cst_20 = arith.constant dense<0.000000e+00> : vector<8xf32>
      %43 = vector.multi_reduction <add>, %39, %cst_20 [1] : vector<8x8xf32> to vector<8xf32>
      %44 = vector.shape_cast %43 : vector<8xf32> to vector<8x1xf32>
      %45 = arith.addf %42, %44 : vector<8x1xf32>
      %c0_21 = arith.constant 0 : index
      %c0_22 = arith.constant 0 : index
      %c0_23 = arith.constant 0 : index
      %46 = vector.load %arg12[%c0_21, %c0_22, %c0_23] : memref<4x8x1xf32, #tpu.memory_space<vmem>>, vector<1x8x1xf32>
      %47 = vector.shape_cast %46 : vector<1x8x1xf32> to vector<8x1xf32>
      %48 = vector.shape_cast %45 : vector<8x1xf32> to vector<1x8x1xf32>
      tpu.vector_store %arg12[%c0_21, %c0_22, %c0_23], %48 {strides = array<i32>} : memref<4x8x1xf32, #tpu.memory_space<vmem>>, vector<1x8x1xf32>,
      %c0_24 = arith.constant 0 : index
      %c0_25 = arith.constant 0 : index
      %c0_26 = arith.constant 0 : index
      %49 = vector.load %arg13[%c0_24, %c0_25, %c0_26] : memref<4x8x8xf32, #tpu.memory_space<vmem>>, vector<1x8x8xf32>
      %50 = vector.shape_cast %49 : vector<1x8x8xf32> to vector<8x8xf32>
      %51 = vector.broadcast %36 : vector<8x1xf32> to vector<8x8xf32>
      %52 = arith.mulf %51, %50 : vector<8x8xf32>
      %cst_27 = arith.constant dense<0.000000e+00> : vector<8x8xf32>
      %53 = tpu.matmul %39, %26, %cst_27 {dimension_numbers = #tpu.dot_dimension_numbers<[1], [0], [0], [1], [0, 0, 1, 1], [], []>} : vector<8x8xf32>, vector<8x8xf32>, vector<8x8xf32> -> vector<8x8xf32>
      %54 = arith.addf %52, %53 : vector<8x8xf32>
      %c0_28 = arith.constant 0 : index
      %c0_29 = arith.constant 0 : index
      %c0_30 = arith.constant 0 : index
      %55 = vector.load %arg13[%c0_28, %c0_29, %c0_30] : memref<4x8x8xf32, #tpu.memory_space<vmem>>, vector<1x8x8xf32>
      %56 = vector.shape_cast %55 : vector<1x8x8xf32> to vector<8x8xf32>
      %57 = vector.shape_cast %54 : vector<8x8xf32> to vector<1x8x8xf32>
      tpu.vector_store %arg13[%c0_28, %c0_29, %c0_30], %57 {strides = array<i32>} : memref<4x8x8xf32, #tpu.memory_space<vmem>>, vector<1x8x8xf32>,
      %c0_31 = arith.constant 0 : index
      %c0_32 = arith.constant 0 : index
      %c0_33 = arith.constant 0 : index
      %58 = vector.load %arg11[%c0_31, %c0_32, %c0_33] : memref<4x8x1xf32, #tpu.memory_space<vmem>>, vector<1x8x1xf32>
      %59 = vector.shape_cast %58 : vector<1x8x1xf32> to vector<8x1xf32>
      %60 = vector.shape_cast %34 : vector<8x1xf32> to vector<1x8x1xf32>
      tpu.vector_store %arg11[%c0_31, %c0_32, %c0_33], %60 {strides = array<i32>} : memref<4x8x1xf32, #tpu.memory_space<vmem>>, vector<1x8x1xf32>,
      %61 = vector.extract_strided_slice %23 {offsets = [0, 8], sizes = [8, 8], strides = [1, 1]} : vector<8x32xf32> to vector<8x8xf32>
      %62 = vector.extract_strided_slice %15 {offsets = [0, 8], sizes = [8, 8], strides = [1, 1]} : vector<8x64xf32> to vector<8x8xf32>
      %63 = vector.extract_strided_slice %15 {offsets = [0, 40], sizes = [8, 8], strides = [1, 1]} : vector<8x64xf32> to vector<8x8xf32>
      %cst_34 = arith.constant dense<0.000000e+00> : vector<8x8xf32>
      %64 = tpu.matmul %61, %62, %cst_34 {dimension_numbers = #tpu.dot_dimension_numbers<[1], [1], [0], [0], [0, 0, 1, 0], [], []>} : vector<8x8xf32>, vector<8x8xf32>, vector<8x8xf32> -> vector<8x8xf32>
      %cst_35 = arith.constant 0xFF800000 : f32
      %65 = vector.broadcast %cst_35 : f32 to vector<8x8xf32>
      %66 = arith.select %22, %64, %65 : vector<8x8xi1>, vector<8x8xf32>
      %c1 = arith.constant 1 : index
      %c0_36 = arith.constant 0 : index
      %c0_37 = arith.constant 0 : index
      %67 = vector.load %arg11[%c1, %c0_36, %c0_37] : memref<4x8x1xf32, #tpu.memory_space<vmem>>, vector<1x8x1xf32>
      %68 = vector.shape_cast %67 : vector<1x8x1xf32> to vector<8x1xf32>
      %cst_38 = arith.constant dense<0xFF800000> : vector<8xf32>
      %69 = vector.multi_reduction <maximumf>, %66, %cst_38 [1] : vector<8x8xf32> to vector<8xf32>
      %70 = vector.shape_cast %69 : vector<8xf32> to vector<8x1xf32>
      %71 = arith.maximumf %68, %70 : vector<8x1xf32>
      %72 = arith.subf %68, %71 : vector<8x1xf32>
      %73 = math.exp %72 : vector<8x1xf32>
      %74 = vector.broadcast %71 : vector<8x1xf32> to vector<8x8xf32>
      %75 = arith.subf %66, %74 : vector<8x8xf32>
      %76 = math.exp %75 : vector<8x8xf32>
      %c1_39 = arith.constant 1 : index
      %c0_40 = arith.constant 0 : index
      %c0_41 = arith.constant 0 : index
      %77 = vector.load %arg12[%c1_39, %c0_40, %c0_41] : memref<4x8x1xf32, #tpu.memory_space<vmem>>, vector<1x8x1xf32>
      %78 = vector.shape_cast %77 : vector<1x8x1xf32> to vector<8x1xf32>
      %79 = arith.mulf %73, %78 : vector<8x1xf32>
      %cst_42 = arith.constant dense<0.000000e+00> : vector<8xf32>
      %80 = vector.multi_reduction <add>, %76, %cst_42 [1] : vector<8x8xf32> to vector<8xf32>
      %81 = vector.shape_cast %80 : vector<8xf32> to vector<8x1xf32>
      %82 = arith.addf %79, %81 : vector<8x1xf32>
      %c1_43 = arith.constant 1 : index
      %c0_44 = arith.constant 0 : index
      %c0_45 = arith.constant 0 : index
      %83 = vector.load %arg12[%c1_43, %c0_44, %c0_45] : memref<4x8x1xf32, #tpu.memory_space<vmem>>, vector<1x8x1xf32>
      %84 = vector.shape_cast %83 : vector<1x8x1xf32> to vector<8x1xf32>
      %85 = vector.shape_cast %82 : vector<8x1xf32> to vector<1x8x1xf32>
      tpu.vector_store %arg12[%c1_43, %c0_44, %c0_45], %85 {strides = array<i32>} : memref<4x8x1xf32, #tpu.memory_space<vmem>>, vector<1x8x1xf32>,
      %c1_46 = arith.constant 1 : index
      %c0_47 = arith.constant 0 : index
      %c0_48 = arith.constant 0 : index
      %86 = vector.load %arg13[%c1_46, %c0_47, %c0_48] : memref<4x8x8xf32, #tpu.memory_space<vmem>>, vector<1x8x8xf32>
      %87 = vector.shape_cast %86 : vector<1x8x8xf32> to vector<8x8xf32>
      %88 = vector.broadcast %73 : vector<8x1xf32> to vector<8x8xf32>
      %89 = arith.mulf %88, %87 : vector<8x8xf32>
      %cst_49 = arith.constant dense<0.000000e+00> : vector<8x8xf32>
      %90 = tpu.matmul %76, %63, %cst_49 {dimension_numbers = #tpu.dot_dimension_numbers<[1], [0], [0], [1], [0, 0, 1, 1], [], []>} : vector<8x8xf32>, vector<8x8xf32>, vector<8x8xf32> -> vector<8x8xf32>
      %91 = arith.addf %89, %90 : vector<8x8xf32>
      %c1_50 = arith.constant 1 : index
      %c0_51 = arith.constant 0 : index
      %c0_52 = arith.constant 0 : index
      %92 = vector.load %arg13[%c1_50, %c0_51, %c0_52] : memref<4x8x8xf32, #tpu.memory_space<vmem>>, vector<1x8x8xf32>
      %93 = vector.shape_cast %92 : vector<1x8x8xf32> to vector<8x8xf32>
      %94 = vector.shape_cast %91 : vector<8x8xf32> to vector<1x8x8xf32>
      tpu.vector_store %arg13[%c1_50, %c0_51, %c0_52], %94 {strides = array<i32>} : memref<4x8x8xf32, #tpu.memory_space<vmem>>, vector<1x8x8xf32>,
      %c1_53 = arith.constant 1 : index
      %c0_54 = arith.constant 0 : index
      %c0_55 = arith.constant 0 : index
      %95 = vector.load %arg11[%c1_53, %c0_54, %c0_55] : memref<4x8x1xf32, #tpu.memory_space<vmem>>, vector<1x8x1xf32>
      %96 = vector.shape_cast %95 : vector<1x8x1xf32> to vector<8x1xf32>
      %97 = vector.shape_cast %71 : vector<8x1xf32> to vector<1x8x1xf32>
      tpu.vector_store %arg11[%c1_53, %c0_54, %c0_55], %97 {strides = array<i32>} : memref<4x8x1xf32, #tpu.memory_space<vmem>>, vector<1x8x1xf32>,
      %98 = vector.extract_strided_slice %23 {offsets = [0, 16], sizes = [8, 8], strides = [1, 1]} : vector<8x32xf32> to vector<8x8xf32>
      %99 = vector.extract_strided_slice %15 {offsets = [0, 16], sizes = [8, 8], strides = [1, 1]} : vector<8x64xf32> to vector<8x8xf32>
      %100 = vector.extract_strided_slice %15 {offsets = [0, 48], sizes = [8, 8], strides = [1, 1]} : vector<8x64xf32> to vector<8x8xf32>
      %cst_56 = arith.constant dense<0.000000e+00> : vector<8x8xf32>
      %101 = tpu.matmul %98, %99, %cst_56 {dimension_numbers = #tpu.dot_dimension_numbers<[1], [1], [0], [0], [0, 0, 1, 0], [], []>} : vector<8x8xf32>, vector<8x8xf32>, vector<8x8xf32> -> vector<8x8xf32>
      %cst_57 = arith.constant 0xFF800000 : f32
      %102 = vector.broadcast %cst_57 : f32 to vector<8x8xf32>
      %103 = arith.select %22, %101, %102 : vector<8x8xi1>, vector<8x8xf32>
      %c2 = arith.constant 2 : index
      %c0_58 = arith.constant 0 : index
      %c0_59 = arith.constant 0 : index
      %104 = vector.load %arg11[%c2, %c0_58, %c0_59] : memref<4x8x1xf32, #tpu.memory_space<vmem>>, vector<1x8x1xf32>
      %105 = vector.shape_cast %104 : vector<1x8x1xf32> to vector<8x1xf32>
      %cst_60 = arith.constant dense<0xFF800000> : vector<8xf32>
      %106 = vector.multi_reduction <maximumf>, %103, %cst_60 [1] : vector<8x8xf32> to vector<8xf32>
      %107 = vector.shape_cast %106 : vector<8xf32> to vector<8x1xf32>
      %108 = arith.maximumf %105, %107 : vector<8x1xf32>
      %109 = arith.subf %105, %108 : vector<8x1xf32>
      %110 = math.exp %109 : vector<8x1xf32>
      %111 = vector.broadcast %108 : vector<8x1xf32> to vector<8x8xf32>
      %112 = arith.subf %103, %111 : vector<8x8xf32>
      %113 = math.exp %112 : vector<8x8xf32>
      %c2_61 = arith.constant 2 : index
      %c0_62 = arith.constant 0 : index
      %c0_63 = arith.constant 0 : index
      %114 = vector.load %arg12[%c2_61, %c0_62, %c0_63] : memref<4x8x1xf32, #tpu.memory_space<vmem>>, vector<1x8x1xf32>
      %115 = vector.shape_cast %114 : vector<1x8x1xf32> to vector<8x1xf32>
      %116 = arith.mulf %110, %115 : vector<8x1xf32>
      %cst_64 = arith.constant dense<0.000000e+00> : vector<8xf32>
      %117 = vector.multi_reduction <add>, %113, %cst_64 [1] : vector<8x8xf32> to vector<8xf32>
      %118 = vector.shape_cast %117 : vector<8xf32> to vector<8x1xf32>
      %119 = arith.addf %116, %118 : vector<8x1xf32>
      %c2_65 = arith.constant 2 : index
      %c0_66 = arith.constant 0 : index
      %c0_67 = arith.constant 0 : index
      %120 = vector.load %arg12[%c2_65, %c0_66, %c0_67] : memref<4x8x1xf32, #tpu.memory_space<vmem>>, vector<1x8x1xf32>
      %121 = vector.shape_cast %120 : vector<1x8x1xf32> to vector<8x1xf32>
      %122 = vector.shape_cast %119 : vector<8x1xf32> to vector<1x8x1xf32>
      tpu.vector_store %arg12[%c2_65, %c0_66, %c0_67], %122 {strides = array<i32>} : memref<4x8x1xf32, #tpu.memory_space<vmem>>, vector<1x8x1xf32>,
      %c2_68 = arith.constant 2 : index
      %c0_69 = arith.constant 0 : index
      %c0_70 = arith.constant 0 : index
      %123 = vector.load %arg13[%c2_68, %c0_69, %c0_70] : memref<4x8x8xf32, #tpu.memory_space<vmem>>, vector<1x8x8xf32>
      %124 = vector.shape_cast %123 : vector<1x8x8xf32> to vector<8x8xf32>
      %125 = vector.broadcast %110 : vector<8x1xf32> to vector<8x8xf32>
      %126 = arith.mulf %125, %124 : vector<8x8xf32>
      %cst_71 = arith.constant dense<0.000000e+00> : vector<8x8xf32>
      %127 = tpu.matmul %113, %100, %cst_71 {dimension_numbers = #tpu.dot_dimension_numbers<[1], [0], [0], [1], [0, 0, 1, 1], [], []>} : vector<8x8xf32>, vector<8x8xf32>, vector<8x8xf32> -> vector<8x8xf32>
      %128 = arith.addf %126, %127 : vector<8x8xf32>
      %c2_72 = arith.constant 2 : index
      %c0_73 = arith.constant 0 : index
      %c0_74 = arith.constant 0 : index
      %129 = vector.load %arg13[%c2_72, %c0_73, %c0_74] : memref<4x8x8xf32, #tpu.memory_space<vmem>>, vector<1x8x8xf32>
      %130 = vector.shape_cast %129 : vector<1x8x8xf32> to vector<8x8xf32>
      %131 = vector.shape_cast %128 : vector<8x8xf32> to vector<1x8x8xf32>
      tpu.vector_store %arg13[%c2_72, %c0_73, %c0_74], %131 {strides = array<i32>} : memref<4x8x8xf32, #tpu.memory_space<vmem>>, vector<1x8x8xf32>,
      %c2_75 = arith.constant 2 : index
      %c0_76 = arith.constant 0 : index
      %c0_77 = arith.constant 0 : index
      %132 = vector.load %arg11[%c2_75, %c0_76, %c0_77] : memref<4x8x1xf32, #tpu.memory_space<vmem>>, vector<1x8x1xf32>
      %133 = vector.shape_cast %132 : vector<1x8x1xf32> to vector<8x1xf32>
      %134 = vector.shape_cast %108 : vector<8x1xf32> to vector<1x8x1xf32>
      tpu.vector_store %arg11[%c2_75, %c0_76, %c0_77], %134 {strides = array<i32>} : memref<4x8x1xf32, #tpu.memory_space<vmem>>, vector<1x8x1xf32>,
      %135 = vector.extract_strided_slice %23 {offsets = [0, 24], sizes = [8, 8], strides = [1, 1]} : vector<8x32xf32> to vector<8x8xf32>
      %136 = vector.extract_strided_slice %15 {offsets = [0, 24], sizes = [8, 8], strides = [1, 1]} : vector<8x64xf32> to vector<8x8xf32>
      %137 = vector.extract_strided_slice %15 {offsets = [0, 56], sizes = [8, 8], strides = [1, 1]} : vector<8x64xf32> to vector<8x8xf32>
      %cst_78 = arith.constant dense<0.000000e+00> : vector<8x8xf32>
      %138 = tpu.matmul %135, %136, %cst_78 {dimension_numbers = #tpu.dot_dimension_numbers<[1], [1], [0], [0], [0, 0, 1, 0], [], []>} : vector<8x8xf32>, vector<8x8xf32>, vector<8x8xf32> -> vector<8x8xf32>
      %cst_79 = arith.constant 0xFF800000 : f32
      %139 = vector.broadcast %cst_79 : f32 to vector<8x8xf32>
      %140 = arith.select %22, %138, %139 : vector<8x8xi1>, vector<8x8xf32>
      %c3 = arith.constant 3 : index
      %c0_80 = arith.constant 0 : index
      %c0_81 = arith.constant 0 : index
      %141 = vector.load %arg11[%c3, %c0_80, %c0_81] : memref<4x8x1xf32, #tpu.memory_space<vmem>>, vector<1x8x1xf32>
      %142 = vector.shape_cast %141 : vector<1x8x1xf32> to vector<8x1xf32>
      %cst_82 = arith.constant dense<0xFF800000> : vector<8xf32>
      %143 = vector.multi_reduction <maximumf>, %140, %cst_82 [1] : vector<8x8xf32> to vector<8xf32>
      %144 = vector.shape_cast %143 : vector<8xf32> to vector<8x1xf32>
      %145 = arith.maximumf %142, %144 : vector<8x1xf32>
      %146 = arith.subf %142, %145 : vector<8x1xf32>
      %147 = math.exp %146 : vector<8x1xf32>
      %148 = vector.broadcast %145 : vector<8x1xf32> to vector<8x8xf32>
      %149 = arith.subf %140, %148 : vector<8x8xf32>
      %150 = math.exp %149 : vector<8x8xf32>
      %c3_83 = arith.constant 3 : index
      %c0_84 = arith.constant 0 : index
      %c0_85 = arith.constant 0 : index
      %151 = vector.load %arg12[%c3_83, %c0_84, %c0_85] : memref<4x8x1xf32, #tpu.memory_space<vmem>>, vector<1x8x1xf32>
      %152 = vector.shape_cast %151 : vector<1x8x1xf32> to vector<8x1xf32>
      %153 = arith.mulf %147, %152 : vector<8x1xf32>
      %cst_86 = arith.constant dense<0.000000e+00> : vector<8xf32>
      %154 = vector.multi_reduction <add>, %150, %cst_86 [1] : vector<8x8xf32> to vector<8xf32>
      %155 = vector.shape_cast %154 : vector<8xf32> to vector<8x1xf32>
      %156 = arith.addf %153, %155 : vector<8x1xf32>
      %c3_87 = arith.constant 3 : index
      %c0_88 = arith.constant 0 : index
      %c0_89 = arith.constant 0 : index
      %157 = vector.load %arg12[%c3_87, %c0_88, %c0_89] : memref<4x8x1xf32, #tpu.memory_space<vmem>>, vector<1x8x1xf32>
      %158 = vector.shape_cast %157 : vector<1x8x1xf32> to vector<8x1xf32>
      %159 = vector.shape_cast %156 : vector<8x1xf32> to vector<1x8x1xf32>
      tpu.vector_store %arg12[%c3_87, %c0_88, %c0_89], %159 {strides = array<i32>} : memref<4x8x1xf32, #tpu.memory_space<vmem>>, vector<1x8x1xf32>,
      %c3_90 = arith.constant 3 : index
      %c0_91 = arith.constant 0 : index
      %c0_92 = arith.constant 0 : index
      %160 = vector.load %arg13[%c3_90, %c0_91, %c0_92] : memref<4x8x8xf32, #tpu.memory_space<vmem>>, vector<1x8x8xf32>
      %161 = vector.shape_cast %160 : vector<1x8x8xf32> to vector<8x8xf32>
      %162 = vector.broadcast %147 : vector<8x1xf32> to vector<8x8xf32>
      %163 = arith.mulf %162, %161 : vector<8x8xf32>
      %cst_93 = arith.constant dense<0.000000e+00> : vector<8x8xf32>
      %164 = tpu.matmul %150, %137, %cst_93 {dimension_numbers = #tpu.dot_dimension_numbers<[1], [0], [0], [1], [0, 0, 1, 1], [], []>} : vector<8x8xf32>, vector<8x8xf32>, vector<8x8xf32> -> vector<8x8xf32>
      %165 = arith.addf %163, %164 : vector<8x8xf32>
      %c3_94 = arith.constant 3 : index
      %c0_95 = arith.constant 0 : index
      %c0_96 = arith.constant 0 : index
      %166 = vector.load %arg13[%c3_94, %c0_95, %c0_96] : memref<4x8x8xf32, #tpu.memory_space<vmem>>, vector<1x8x8xf32>
      %167 = vector.shape_cast %166 : vector<1x8x8xf32> to vector<8x8xf32>
      %168 = vector.shape_cast %165 : vector<8x8xf32> to vector<1x8x8xf32>
      tpu.vector_store %arg13[%c3_94, %c0_95, %c0_96], %168 {strides = array<i32>} : memref<4x8x8xf32, #tpu.memory_space<vmem>>, vector<1x8x8xf32>,
      %c3_97 = arith.constant 3 : index
      %c0_98 = arith.constant 0 : index
      %c0_99 = arith.constant 0 : index
      %169 = vector.load %arg11[%c3_97, %c0_98, %c0_99] : memref<4x8x1xf32, #tpu.memory_space<vmem>>, vector<1x8x1xf32>
      %170 = vector.shape_cast %169 : vector<1x8x1xf32> to vector<8x1xf32>
      %171 = vector.shape_cast %145 : vector<8x1xf32> to vector<1x8x1xf32>
      tpu.vector_store %arg11[%c3_97, %c0_98, %c0_99], %171 {strides = array<i32>} : memref<4x8x1xf32, #tpu.memory_space<vmem>>, vector<1x8x1xf32>,
    } else {
    }
    %c0_i32_3 = arith.constant 0 : i32
    %9 = arith.cmpi eq, %arg2, %c0_i32_3 : i32
    %10 = arith.extui %9 : i1 to i32
    %c0_i32_4 = arith.constant 0 : i32
    %11 = arith.cmpi ne, %10, %c0_i32_4 : i32
    scf.if %11 {
      %c0 = arith.constant 0 : index
      %c0_5 = arith.constant 0 : index
      %12 = vector.load %arg7[%c0, %c0_5] : memref<32x32xf32, #tpu.memory_space<vmem>>, vector<32x32xf32>
      %cst = arith.constant 0.000000e+00 : f32
      %13 = vector.broadcast %cst : f32 to vector<8x32xf32>
      %c0_6 = arith.constant 0 : index
      %c0_7 = arith.constant 0 : index
      %c0_8 = arith.constant 0 : index
      %14 = vector.load %arg13[%c0_6, %c0_7, %c0_8] : memref<4x8x8xf32, #tpu.memory_space<vmem>>, vector<1x8x8xf32>
      %15 = vector.shape_cast %14 : vector<1x8x8xf32> to vector<8x8xf32>
      %c0_9 = arith.constant 0 : index
      %c0_10 = arith.constant 0 : index
      %c0_11 = arith.constant 0 : index
      %16 = vector.load %arg12[%c0_9, %c0_10, %c0_11] : memref<4x8x1xf32, #tpu.memory_space<vmem>>, vector<1x8x1xf32>
      %17 = vector.shape_cast %16 : vector<1x8x1xf32> to vector<8x1xf32>
      %18 = tpu.reciprocal %17 {approx = true} : vector<8x1xf32> -> vector<8x1xf32>
      %19 = vector.broadcast %18 : vector<8x1xf32> to vector<8x8xf32>
      %20 = arith.mulf %15, %19 : vector<8x8xf32>
      %21 = vector.extract_strided_slice %12 {offsets = [0, 0], sizes = [8, 32], strides = [1, 1]} : vector<32x32xf32> to vector<8x32xf32>
      %cst_12 = arith.constant dense<0.000000e+00> : vector<8x32xf32>
      %22 = tpu.matmul %20, %21, %cst_12 {dimension_numbers = #tpu.dot_dimension_numbers<[1], [0], [0], [1], [0, 0, 1, 1], [], []>} : vector<8x8xf32>, vector<8x32xf32>, vector<8x32xf32> -> vector<8x32xf32>
      %23 = arith.addf %13, %22 : vector<8x32xf32>
      %c1 = arith.constant 1 : index
      %c0_13 = arith.constant 0 : index
      %c0_14 = arith.constant 0 : index
      %24 = vector.load %arg13[%c1, %c0_13, %c0_14] : memref<4x8x8xf32, #tpu.memory_space<vmem>>, vector<1x8x8xf32>
      %25 = vector.shape_cast %24 : vector<1x8x8xf32> to vector<8x8xf32>
      %c1_15 = arith.constant 1 : index
      %c0_16 = arith.constant 0 : index
      %c0_17 = arith.constant 0 : index
      %26 = vector.load %arg12[%c1_15, %c0_16, %c0_17] : memref<4x8x1xf32, #tpu.memory_space<vmem>>, vector<1x8x1xf32>
      %27 = vector.shape_cast %26 : vector<1x8x1xf32> to vector<8x1xf32>
      %28 = tpu.reciprocal %27 {approx = true} : vector<8x1xf32> -> vector<8x1xf32>
      %29 = vector.broadcast %28 : vector<8x1xf32> to vector<8x8xf32>
      %30 = arith.mulf %25, %29 : vector<8x8xf32>
      %31 = vector.extract_strided_slice %12 {offsets = [8, 0], sizes = [8, 32], strides = [1, 1]} : vector<32x32xf32> to vector<8x32xf32>
      %cst_18 = arith.constant dense<0.000000e+00> : vector<8x32xf32>
      %32 = tpu.matmul %30, %31, %cst_18 {dimension_numbers = #tpu.dot_dimension_numbers<[1], [0], [0], [1], [0, 0, 1, 1], [], []>} : vector<8x8xf32>, vector<8x32xf32>, vector<8x32xf32> -> vector<8x32xf32>
      %33 = arith.addf %23, %32 : vector<8x32xf32>
      %c2 = arith.constant 2 : index
      %c0_19 = arith.constant 0 : index
      %c0_20 = arith.constant 0 : index
      %34 = vector.load %arg13[%c2, %c0_19, %c0_20] : memref<4x8x8xf32, #tpu.memory_space<vmem>>, vector<1x8x8xf32>
      %35 = vector.shape_cast %34 : vector<1x8x8xf32> to vector<8x8xf32>
      %c2_21 = arith.constant 2 : index
      %c0_22 = arith.constant 0 : index
      %c0_23 = arith.constant 0 : index
      %36 = vector.load %arg12[%c2_21, %c0_22, %c0_23] : memref<4x8x1xf32, #tpu.memory_space<vmem>>, vector<1x8x1xf32>
      %37 = vector.shape_cast %36 : vector<1x8x1xf32> to vector<8x1xf32>
      %38 = tpu.reciprocal %37 {approx = true} : vector<8x1xf32> -> vector<8x1xf32>
      %39 = vector.broadcast %38 : vector<8x1xf32> to vector<8x8xf32>
      %40 = arith.mulf %35, %39 : vector<8x8xf32>
      %41 = vector.extract_strided_slice %12 {offsets = [16, 0], sizes = [8, 32], strides = [1, 1]} : vector<32x32xf32> to vector<8x32xf32>
      %cst_24 = arith.constant dense<0.000000e+00> : vector<8x32xf32>
      %42 = tpu.matmul %40, %41, %cst_24 {dimension_numbers = #tpu.dot_dimension_numbers<[1], [0], [0], [1], [0, 0, 1, 1], [], []>} : vector<8x8xf32>, vector<8x32xf32>, vector<8x32xf32> -> vector<8x32xf32>
      %43 = arith.addf %33, %42 : vector<8x32xf32>
      %c3 = arith.constant 3 : index
      %c0_25 = arith.constant 0 : index
      %c0_26 = arith.constant 0 : index
      %44 = vector.load %arg13[%c3, %c0_25, %c0_26] : memref<4x8x8xf32, #tpu.memory_space<vmem>>, vector<1x8x8xf32>
      %45 = vector.shape_cast %44 : vector<1x8x8xf32> to vector<8x8xf32>
      %c3_27 = arith.constant 3 : index
      %c0_28 = arith.constant 0 : index
      %c0_29 = arith.constant 0 : index
      %46 = vector.load %arg12[%c3_27, %c0_28, %c0_29] : memref<4x8x1xf32, #tpu.memory_space<vmem>>, vector<1x8x1xf32>
      %47 = vector.shape_cast %46 : vector<1x8x1xf32> to vector<8x1xf32>
      %48 = tpu.reciprocal %47 {approx = true} : vector<8x1xf32> -> vector<8x1xf32>
      %49 = vector.broadcast %48 : vector<8x1xf32> to vector<8x8xf32>
      %50 = arith.mulf %45, %49 : vector<8x8xf32>
      %51 = vector.extract_strided_slice %12 {offsets = [24, 0], sizes = [8, 32], strides = [1, 1]} : vector<32x32xf32> to vector<8x32xf32>
      %cst_30 = arith.constant dense<0.000000e+00> : vector<8x32xf32>
      %52 = tpu.matmul %50, %51, %cst_30 {dimension_numbers = #tpu.dot_dimension_numbers<[1], [0], [0], [1], [0, 0, 1, 1], [], []>} : vector<8x8xf32>, vector<8x32xf32>, vector<8x32xf32> -> vector<8x32xf32>
      %53 = arith.addf %43, %52 : vector<8x32xf32>
      %c0_31 = arith.constant 0 : index
      %c0_32 = arith.constant 0 : index
      %54 = vector.load %arg8[%c0_31, %c0_32] : memref<1x32xf32, #tpu.memory_space<vmem>>, vector<1x32xf32>
      %55 = vector.broadcast %54 : vector<1x32xf32> to vector<8x32xf32>
      %56 = arith.addf %53, %55 : vector<8x32xf32>
      %c0_33 = arith.constant 0 : index
      %c0_34 = arith.constant 0 : index
      %c0_35 = arith.constant 0 : index
      %57 = vector.load %arg9[%c0_33, %c0_34, %c0_35] : memref<1x8x32xf32, #tpu.memory_space<vmem>>, vector<1x8x32xf32>
      %58 = vector.shape_cast %57 : vector<1x8x32xf32> to vector<8x32xf32>
      %59 = vector.shape_cast %56 : vector<8x32xf32> to vector<1x8x32xf32>
      tpu.vector_store %arg9[%c0_33, %c0_34, %c0_35], %59 {strides = array<i32>} : memref<1x8x32xf32, #tpu.memory_space<vmem>>, vector<1x8x32xf32>,
    } else {
    }
    return
  }
  func.func @transform_0(%arg0: i32, %arg1: i32, %arg2: i32) -> (i32, i32, i32) {
    %c0_i32 = arith.constant 0 : i32
    %c0_i32_0 = arith.constant 0 : i32
    return %arg0, %arg1, %c0_i32 : i32, i32, i32
  }
  func.func @transform_1(%arg0: i32, %arg1: i32, %arg2: i32) -> (i32, i32, i32) {
    %c0_i32 = arith.constant 0 : i32
    %c0_i32_0 = arith.constant 0 : i32
    return %arg0, %arg2, %c0_i32 : i32, i32, i32
  }
  func.func @transform_2(%arg0: i32, %arg1: i32, %arg2: i32) -> (i32, i32) {
    %c0_i32 = arith.constant 0 : i32
    %c0_i32_0 = arith.constant 0 : i32
    %c0_i32_1 = arith.constant 0 : i32
    return %c0_i32, %c0_i32_0 : i32, i32
  }
  func.func @transform_3(%arg0: i32, %arg1: i32, %arg2: i32) -> (i32, i32) {
    %c0_i32 = arith.constant 0 : i32
    %c0_i32_0 = arith.constant 0 : i32
    %c0_i32_1 = arith.constant 0 : i32
    return %c0_i32, %c0_i32_0 : i32, i32
  }
  func.func @transform_4(%arg0: i32, %arg1: i32, %arg2: i32) -> (i32, i32) {
    %c0_i32 = arith.constant 0 : i32
    %c0_i32_0 = arith.constant 0 : i32
    %c0_i32_1 = arith.constant 0 : i32
    return %c0_i32, %c0_i32_0 : i32, i32
  }
  func.func @transform_5(%arg0: i32, %arg1: i32, %arg2: i32) -> (i32, i32) {
    %c0_i32 = arith.constant 0 : i32
    %c0_i32_0 = arith.constant 0 : i32
    %c0_i32_1 = arith.constant 0 : i32
    return %c0_i32, %c0_i32_0 : i32, i32
  }
  func.func @transform_6(%arg0: i32, %arg1: i32, %arg2: i32) -> (i32, i32, i32) {
    %c0_i32 = arith.constant 0 : i32
    %c0_i32_0 = arith.constant 0 : i32
    return %arg0, %arg1, %c0_i32 : i32, i32, i32
  }
}

</mosaic_0001>

<llo_original>
// kernel: tpu_custom_call.1
$region0: #{tpu_custom_call.1}
  #allocation0 [shape = 'u32[]', space=smem, size = 0x4, offset = 0x4, fixed_abs, tag = 'smem constant byte address 0x4 - core index']
  #allocation1 [shape = 'u32[72,128]{1,0:T(1,128)}', space=vmem, size = 0x9000, scoped, tag = 'internal scratch']
  #allocation2 [shape = 'f32[8,32]{1,0:T(8,128)}', space=vmem, size = 0x1000, scoped, tag = 'scratch operand']
  #allocation3 [shape = 'f32[4,8,1]{2,1,0:T(8,128)}', space=vmem, size = 0x4000, scoped, tag = 'scratch operand']
  #allocation4 [shape = 'f32[4,8,1]{2,1,0:T(8,128)}', space=vmem, size = 0x4000, scoped, tag = 'scratch operand']
  #allocation5 [shape = 'f32[4,8,8]{2,1,0:T(8,128)}', space=vmem, size = 0x4000, scoped, tag = 'scratch operand']
  %s0 = inlined_call_operand.hbm [shape: f32[2,8,32], index: 0, kind: input, shape index: {}]
  %s1 = inlined_call_operand.hbm [shape: f32[2,8,32], index: 1, kind: input, shape index: {}]
  %s2 = inlined_call_operand.hbm [shape: f32[32,32], index: 2, kind: input, shape index: {}]
  %s3 = inlined_call_operand.hbm [shape: f32[32,64], index: 3, kind: input, shape index: {}]
  %s4 = inlined_call_operand.hbm [shape: f32[32,32], index: 4, kind: input, shape index: {}]
  %s5 = inlined_call_operand.vmem [shape: f32[1,32], index: 5, kind: input, shape index: {}]
  %s6 = inlined_call_operand.hbm [shape: f32[2,8,32], index: 6, kind: output, shape index: {}]
  %s7 = sld [smem:[#allocation0]]
  $region89: #{tpu_custom_call.1} parent=0
    _
  %s9 = ssub.s32 1, %s7
  %s10 = scalar_select 0, %s9, %s7
  $region1: #{tpu_custom_call.1} parent=0
    #allocation6 [shape = 'u8[8192]{0}', space=vmem, size = 0x2000, scoped, tag = 'input window, operand 0']
    #allocation7 [shape = 's32[2]{0}', space=sflag, size = 0x8, scoped, tag = 'scoped memory for tpu_custom_call.1']
    #allocation8 [shape = 's32[2]{0}', space=sflag, size = 0x8, scoped, tag = 'scoped memory for tpu_custom_call.1']
    #allocation9 [shape = 'u8[8192]{0}', space=vmem, size = 0x2000, scoped, tag = 'input window, operand 1']
    #allocation10 [shape = 's32[2]{0}', space=sflag, size = 0x8, scoped, tag = 'scoped memory for tpu_custom_call.1']
    #allocation11 [shape = 'u8[16384]{0}', space=vmem, size = 0x4000, scoped, tag = 'input window, operand 2, single buffered']
    #allocation12 [shape = 'u8[16384]{0}', space=vmem, size = 0x4000, scoped, tag = 'input window, operand 3, single buffered']
    #allocation13 [shape = 's32[1]{0}', space=sflag, size = 0x4, scoped, tag = 'scoped memory for tpu_custom_call.1']
    #allocation14 [shape = 'u8[16384]{0}', space=vmem, size = 0x4000, scoped, tag = 'input window, operand 4, single buffered']
    #allocation15 [shape = 'u8[8192]{0}', space=vmem, size = 0x2000, scoped, tag = 'output window, operand 0']
    %11 = vsyncpa [#allocation7], 0
    %s12 = scalar_lea.sflag [#allocation7], 1
    %13 = vsyncpa %s12, 0
    %14 = vsyncpa [#allocation10], 0
    %s15 = scalar_lea.sflag [#allocation10], 1
    %16 = vsyncpa %s15, 0
    %17 = vsyncpa [#allocation13], 0
    %18 = vsyncpa [#allocation8], 0
    %s19 = scalar_lea.sflag [#allocation8], 1
    %20 = vsyncpa %s19, 0
    loop: start=0, step=1, limit=4
    $region2: #{tpu_custom_call.1} parent=1 // loop_pre_header
      _
    $region3: #{tpu_custom_call.1} parent=1 // loop_header
      %s22 = sphi 0, %s26
      %p23 = scmp.ge.s32.totalorder %s22, 4
      %s29 = sphi 0, %s48
      %s30 = sphi 0, %s44
      %s31 = sphi 0, %s40
      %s32 = sphi 0, %s29
      %s33 = sphi 0, %s30
      %s34 = sphi 0, %s31
      %s35 = sphi 0, %s32
      %s36 = sphi 0, %s33
      %s37 = sphi 0, %s34
      %s53 = sphi 0, %s55
      %s56 = sphi 0, %s53
      %s57 = sphi 0, %s56
      %s73 = sphi 0, %s57
      %s81 = sphi 0, %s83
      %s84 = sphi 0, %s81
      %s85 = sphi 0, %s84
      %s101 = sphi 0, %s85
      %s105 = sphi 0, %s105
      %s107 = sphi 0, %s105
      %s108 = sphi 0, %s107
      %s122 = sphi 0, %s108
      %s126 = sphi 0, %s126
      %s128 = sphi 0, %s126
      %s129 = sphi 0, %s128
      %s143 = sphi 0, %s129
      %s147 = sphi 0, %s147
      %s149 = sphi 0, %s147
      %s150 = sphi 0, %s149
      %s164 = sphi 0, %s150
      %s168 = sphi 0, %s168
      %s170 = sphi 0, %s168
      %s171 = sphi 0, %s170
      %s185 = sphi 0, %s171
      %s193 = sphi 0, %s195
      %s196 = sphi 0, %s193
      %s197 = sphi 0, %s196
      %s213 = sphi 0, %s197
    $region4: #{tpu_custom_call.1} parent=1 // loop_header_branch
      %25 = sbr.rel (%p23) target = $region8
    $region5: #{tpu_custom_call.1} parent=1 // loop_body
      %s27 = ssub.s32 %s22, 1
      %s28 = ssub.s32 %s22, 2
      %s38 = sadd.s32 1, %s31
      %p39 = scmp.ge.s32.totalorder %s38, 1
      %s40 = scalar_select %p39, 0, %s38
      %s41 = sadd.s32 1, %s30
      %s42 = scalar_select %p39, %s41, %s30
      %p43 = scmp.ge.s32.totalorder %s42, 1
      %s44 = scalar_select %p43, 0, %s42
      %s45 = sadd.s32 1, %s29
      %s46 = scalar_select %p43, %s45, %s29
      %p47 = scmp.ge.s32.totalorder %s46, 2
      %s48 = scalar_select %p47, 0, %s46
      %s49 = ssub.s32 %s29, %s48
      %s50 = ssub.s32 %s30, %s44
      %s51 = sor.u32 %s49, %s50
      %p52 = scmp.eq.s32.totalorder %s51, 0
      %s54 = sadd.s32 %s53, 1
      %s55 = scalar_select %p52, %s53, %s54
      %p58 = pneg %p52
      %p59 = scmp.eq.s32.totalorder %s22, 1
      %p60 = por %p58, %p59
      %p61 = scmp.ne.s32.totalorder %s53, %s56
      %p62 = scmp.eq.s32.totalorder %s22, 0
      %p63 = por %p61, %p62
      %p64 = scmp.ne.s32.totalorder %s53, %s56
      %p65 = scmp.eq.s32.totalorder %s27, 1
      %p66 = por %p64, %p65
      %p67 = scmp.ne.s32.totalorder %s56, %s57
      %p68 = scmp.eq.s32.totalorder %s27, 0
      %p69 = por %p67, %p68
      %p70 = scmp.ne.s32.totalorder %s56, %s57
      %p71 = scmp.eq.s32.totalorder %s28, 1
      %p72 = por %p70, %p71
      %p74 = scmp.ne.s32.totalorder %s57, %s73
      %p75 = scmp.eq.s32.totalorder %s28, 0
      %p76 = por %p74, %p75
      %s77 = ssub.s32 %s29, %s48
      %s78 = ssub.s32 %s31, %s40
      %s79 = sor.u32 %s77, %s78
      %p80 = scmp.eq.s32.totalorder %s79, 0
      %s82 = sadd.s32 %s81, 1
      %s83 = scalar_select %p80, %s81, %s82
      %p86 = pneg %p80
      %p87 = scmp.eq.s32.totalorder %s22, 1
      %p88 = por %p86, %p87
      %p89 = scmp.ne.s32.totalorder %s81, %s84
      %p90 = scmp.eq.s32.totalorder %s22, 0
      %p91 = por %p89, %p90
      %p92 = scmp.ne.s32.totalorder %s81, %s84
      %p93 = scmp.eq.s32.totalorder %s27, 1
      %p94 = por %p92, %p93
      %p95 = scmp.ne.s32.totalorder %s84, %s85
      %p96 = scmp.eq.s32.totalorder %s27, 0
      %p97 = por %p95, %p96
      %p98 = scmp.ne.s32.totalorder %s84, %s85
      %p99 = scmp.eq.s32.totalorder %s28, 1
      %p100 = por %p98, %p99
      %p102 = scmp.ne.s32.totalorder %s85, %s101
      %p103 = scmp.eq.s32.totalorder %s28, 0
      %p104 = por %p102, %p103
      %s106 = sadd.s32 %s105, 1
      %p109 = scmp.eq.s32.totalorder %s22, 1
      %p110 = scmp.ne.s32.totalorder %s105, %s107
      %p111 = scmp.eq.s32.totalorder %s22, 0
      %p112 = por %p110, %p111
      %p113 = scmp.ne.s32.totalorder %s105, %s107
      %p114 = scmp.eq.s32.totalorder %s27, 1
      %p115 = por %p113, %p114
      %p116 = scmp.ne.s32.totalorder %s107, %s108
      %p117 = scmp.eq.s32.totalorder %s27, 0
      %p118 = por %p116, %p117
      %p119 = scmp.ne.s32.totalorder %s107, %s108
      %p120 = scmp.eq.s32.totalorder %s28, 1
      %p121 = por %p119, %p120
      %p123 = scmp.ne.s32.totalorder %s108, %s122
      %p124 = scmp.eq.s32.totalorder %s28, 0
      %p125 = por %p123, %p124
      %s127 = sadd.s32 %s126, 1
      %p130 = scmp.eq.s32.totalorder %s22, 1
      %p131 = scmp.ne.s32.totalorder %s126, %s128
      %p132 = scmp.eq.s32.totalorder %s22, 0
      %p133 = por %p131, %p132
      %p134 = scmp.ne.s32.totalorder %s126, %s128
      %p135 = scmp.eq.s32.totalorder %s27, 1
      %p136 = por %p134, %p135
      %p137 = scmp.ne.s32.totalorder %s128, %s129
      %p138 = scmp.eq.s32.totalorder %s27, 0
      %p139 = por %p137, %p138
      %p140 = scmp.ne.s32.totalorder %s128, %s129
      %p141 = scmp.eq.s32.totalorder %s28, 1
      %p142 = por %p140, %p141
      %p144 = scmp.ne.s32.totalorder %s129, %s143
      %p145 = scmp.eq.s32.totalorder %s28, 0
      %p146 = por %p144, %p145
      %s148 = sadd.s32 %s147, 1
      %p151 = scmp.eq.s32.totalorder %s22, 1
      %p152 = scmp.ne.s32.totalorder %s147, %s149
      %p153 = scmp.eq.s32.totalorder %s22, 0
      %p154 = por %p152, %p153
      %p155 = scmp.ne.s32.totalorder %s147, %s149
      %p156 = scmp.eq.s32.totalorder %s27, 1
      %p157 = por %p155, %p156
      %p158 = scmp.ne.s32.totalorder %s149, %s150
      %p159 = scmp.eq.s32.totalorder %s27, 0
      %p160 = por %p158, %p159
      %p161 = scmp.ne.s32.totalorder %s149, %s150
      %p162 = scmp.eq.s32.totalorder %s28, 1
      %p163 = por %p161, %p162
      %p165 = scmp.ne.s32.totalorder %s150, %s164
      %p166 = scmp.eq.s32.totalorder %s28, 0
      %p167 = por %p165, %p166
      %s169 = sadd.s32 %s168, 1
      %p172 = scmp.eq.s32.totalorder %s22, 1
      %p173 = scmp.ne.s32.totalorder %s168, %s170
      %p174 = scmp.eq.s32.totalorder %s22, 0
      %p175 = por %p173, %p174
      %p176 = scmp.ne.s32.totalorder %s168, %s170
      %p177 = scmp.eq.s32.totalorder %s27, 1
      %p178 = por %p176, %p177
      %p179 = scmp.ne.s32.totalorder %s170, %s171
      %p180 = scmp.eq.s32.totalorder %s27, 0
      %p181 = por %p179, %p180
      %p182 = scmp.ne.s32.totalorder %s170, %s171
      %p183 = scmp.eq.s32.totalorder %s28, 1
      %p184 = por %p182, %p183
      %p186 = scmp.ne.s32.totalorder %s171, %s185
      %p187 = scmp.eq.s32.totalorder %s28, 0
      %p188 = por %p186, %p187
      %s189 = ssub.s32 %s29, %s48
      %s190 = ssub.s32 %s30, %s44
      %s191 = sor.u32 %s189, %s190
      %p192 = scmp.eq.s32.totalorder %s191, 0
      %s194 = sadd.s32 %s193, 1
      %s195 = scalar_select %p192, %s193, %s194
      %p198 = pneg %p192
      %p199 = scmp.eq.s32.totalorder %s22, 1
      %p200 = por %p198, %p199
      %p201 = scmp.ne.s32.totalorder %s193, %s196
      %p202 = scmp.eq.s32.totalorder %s22, 0
      %p203 = por %p201, %p202
      %p204 = scmp.ne.s32.totalorder %s193, %s196
      %p205 = scmp.eq.s32.totalorder %s27, 1
      %p206 = por %p204, %p205
      %p207 = scmp.ne.s32.totalorder %s196, %s197
      %p208 = scmp.eq.s32.totalorder %s27, 0
      %p209 = por %p207, %p208
      %p210 = scmp.ne.s32.totalorder %s196, %s197
      %p211 = scmp.eq.s32.totalorder %s28, 1
      %p212 = por %p210, %p211
      %p214 = scmp.ne.s32.totalorder %s197, %s213
      %p215 = scmp.eq.s32.totalorder %s28, 0
      %p216 = por %p214, %p215
      %p217 = scmp.le.s32.totalorder 1, %s22
      %p218 = scmp.lt.s32.totalorder %s22, 3
      %p219 = pnand %p217, %p218
      %p220 = pneg %p219
      // Predicated region
      $region9: #{tpu_custom_call.1} parent=5 // pred_check
        _
      $region10: #{tpu_custom_call.1} parent=5 // pred_check_branch
        %222 = sbr.rel (%p219) target = $region12
      $region11: #{tpu_custom_call.1} parent=5 // pred_region
        %s223 = ssub.s32 %s22, 1
        // Predicated region
        $region13: #{tpu_custom_call.1} parent=11 // pred_check
          %p224 = pneg %p118
        $region14: #{tpu_custom_call.1} parent=11 // pred_check_branch
          %226 = sbr.rel (%p224) target = $region16
        $region15: #{tpu_custom_call.1} parent=11 // pred_region
          %228 = vsyncadd [#allocation10], 0
          %s229 = sshll.u32 %s2, 4
          %s230 = int_to_ptr.hbm [resolvable:$true] %s229
          %s231 = sshll.u32 [#allocation11], 4
          %s232 = int_to_ptr.vmem [resolvable:$true] %s231
          %237 = dma.hbm_to_vmem [thread:$0]  %s230, 512, %s232, [#allocation10], 128, 128, 8
        $region16: #{tpu_custom_call.1} parent=11 // pred_fallthru
          _
        // Predicated region
        $region17: #{tpu_custom_call.1} parent=11 // pred_check
          %p238 = pneg %p139
        $region18: #{tpu_custom_call.1} parent=11 // pred_check_branch
          %240 = sbr.rel (%p238) target = $region20
        $region19: #{tpu_custom_call.1} parent=11 // pred_region
          %242 = vsyncadd [#allocation13], 0
          %s243 = sshll.u32 %s3, 4
          %s244 = int_to_ptr.hbm [resolvable:$true] %s243
          %s245 = sshll.u32 [#allocation12], 4
          %s246 = int_to_ptr.vmem [resolvable:$true] %s245
          %251 = dma.hbm_to_vmem [thread:$0]  %s244, 512, %s246, [#allocation13], 128, 128, 8
        $region20: #{tpu_custom_call.1} parent=11 // pred_fallthru
          _
        // Predicated region
        $region21: #{tpu_custom_call.1} parent=11 // pred_check
          %p252 = pneg %p160
        $region22: #{tpu_custom_call.1} parent=11 // pred_check_branch
          %254 = sbr.rel (%p252) target = $region24
        $region23: #{tpu_custom_call.1} parent=11 // pred_region
          %256 = vsyncadd [#allocation13], 0
          %s257 = sshll.u32 %s4, 4
          %s258 = int_to_ptr.hbm [resolvable:$true] %s257
          %s259 = sshll.u32 [#allocation14], 4
          %s260 = int_to_ptr.vmem [resolvable:$true] %s259
          %265 = dma.hbm_to_vmem [thread:$0]  %s258, 512, %s260, [#allocation13], 128, 128, 8
        $region24: #{tpu_custom_call.1} parent=11 // pred_fallthru
          _
        // Predicated region
        $region25: #{tpu_custom_call.1} parent=11 // pred_check
          %p266 = pneg %p181
        $region26: #{tpu_custom_call.1} parent=11 // pred_check_branch
          %268 = sbr.rel (%p266) target = $region28
        $region27: #{tpu_custom_call.1} parent=11 // pred_region
          _
        $region28: #{tpu_custom_call.1} parent=11 // pred_fallthru
          _
      $region12: #{tpu_custom_call.1} parent=5 // pred_fallthru
        _
      %p269 = scmp.lt.s32.totalorder %s22, 2
      // Predicated region
      $region29: #{tpu_custom_call.1} parent=5 // pred_check
        %p270 = pneg %p269
      $region30: #{tpu_custom_call.1} parent=5 // pred_check_branch
        %272 = sbr.rel (%p270) target = $region32
      $region31: #{tpu_custom_call.1} parent=5 // pred_region
        // Predicated region
        $region33: #{tpu_custom_call.1} parent=31 // pred_check
          %p273 = pneg %p63
        $region34: #{tpu_custom_call.1} parent=31 // pred_check_branch
          %275 = sbr.rel (%p273) target = $region36
        $region35: #{tpu_custom_call.1} parent=31 // pred_region
          %s276 = sand.u32 %s53, 1
          %s277 = scalar_lea.sflag [#allocation7], %s276
          %s278 = sand.u32 %s53, 1
          %s279 = smul.addr %s278, 8
          %s280 = scalar_lea.vmem [#allocation6], %s279
          %282 = vsyncadd %s277, 0
          %s283 = sadd.s32 %s30, %s29
          %s284 = smul.addr %s283, 8
          %s285 = scalar_lea.hbm %s0, %s284
          %s287 = sshll.u32 %s285, 4
          %s288 = int_to_ptr.hbm [resolvable:$true] %s287
          %s289 = sshll.u32 %s280, 4
          %s290 = int_to_ptr.vmem [resolvable:$true] %s289
          %292 = dma.hbm_to_vmem [thread:$0]  %s288, 128, %s290, %s277
        $region36: #{tpu_custom_call.1} parent=31 // pred_fallthru
          _
        // Predicated region
        $region37: #{tpu_custom_call.1} parent=31 // pred_check
          %p293 = pneg %p91
        $region38: #{tpu_custom_call.1} parent=31 // pred_check_branch
          %295 = sbr.rel (%p293) target = $region40
        $region39: #{tpu_custom_call.1} parent=31 // pred_region
          %s296 = sand.u32 %s22, 1
          %s297 = scalar_lea.sflag [#allocation10], %s296
          %s298 = sand.u32 %s81, 1
          %s299 = smul.addr %s298, 8
          %s300 = scalar_lea.vmem [#allocation9], %s299
          %302 = vsyncadd %s297, 0
          %s303 = sadd.s32 %s31, %s29
          %s304 = smul.addr %s303, 8
          %s305 = scalar_lea.hbm %s1, %s304
          %s307 = sshll.u32 %s305, 4
          %s308 = int_to_ptr.hbm [resolvable:$true] %s307
          %s309 = sshll.u32 %s300, 4
          %s310 = int_to_ptr.vmem [resolvable:$true] %s309
          %312 = dma.hbm_to_vmem [thread:$0]  %s308, 128, %s310, %s297
        $region40: #{tpu_custom_call.1} parent=31 // pred_fallthru
          _
      $region32: #{tpu_custom_call.1} parent=5 // pred_fallthru
        _
      %p313 = scmp.le.s32.totalorder 1, %s22
      %p314 = scmp.lt.s32.totalorder %s22, 3
      %p315 = pnand %p313, %p314
      %p316 = pneg %p315
      // Predicated region
      $region41: #{tpu_custom_call.1} parent=5 // pred_check
        _
      $region42: #{tpu_custom_call.1} parent=5 // pred_check_branch
        %318 = sbr.rel (%p315) target = $region44
      $region43: #{tpu_custom_call.1} parent=5 // pred_region
        %s319 = ssub.s32 %s22, 1
        %s320 = sand.u32 %s56, 1
        %s321 = scalar_lea.sflag [#allocation7], %s320
        %s322 = sand.u32 %s56, 1
        %s323 = smul.addr %s322, 8
        %s324 = scalar_lea.vmem [#allocation6], %s323
        // Predicated region
        $region45: #{tpu_custom_call.1} parent=43 // pred_check
          %p325 = pneg %p69
        $region46: #{tpu_custom_call.1} parent=43 // pred_check_branch
          %327 = sbr.rel (%p325) target = $region48
        $region47: #{tpu_custom_call.1} parent=43 // pred_region
          %329 = dma.done %s321, 128
        $region48: #{tpu_custom_call.1} parent=43 // pred_fallthru
          _
        %s330 = sand.u32 %s27, 1
        %s331 = scalar_lea.sflag [#allocation10], %s330
        %s332 = sand.u32 %s84, 1
        %s333 = smul.addr %s332, 8
        %s334 = scalar_lea.vmem [#allocation9], %s333
        // Predicated region
        $region49: #{tpu_custom_call.1} parent=43 // pred_check
          %p335 = pneg %p97
        $region50: #{tpu_custom_call.1} parent=43 // pred_check_branch
          %337 = sbr.rel (%p335) target = $region52
        $region51: #{tpu_custom_call.1} parent=43 // pred_region
          %339 = dma.done %s331, 128
        $region52: #{tpu_custom_call.1} parent=43 // pred_fallthru
          _
        // Predicated region
        $region53: #{tpu_custom_call.1} parent=43 // pred_check
          %p340 = pneg %p118
        $region54: #{tpu_custom_call.1} parent=43 // pred_check_branch
          %342 = sbr.rel (%p340) target = $region56
        $region55: #{tpu_custom_call.1} parent=43 // pred_region
          %344 = dma.done [#allocation10], 512
        $region56: #{tpu_custom_call.1} parent=43 // pred_fallthru
          _
        // Predicated region
        $region57: #{tpu_custom_call.1} parent=43 // pred_check
          %p345 = pneg %p139
        $region58: #{tpu_custom_call.1} parent=43 // pred_check_branch
          %347 = sbr.rel (%p345) target = $region60
        $region59: #{tpu_custom_call.1} parent=43 // pred_region
          %349 = dma.done [#allocation13], 512
        $region60: #{tpu_custom_call.1} parent=43 // pred_fallthru
          _
        // Predicated region
        $region61: #{tpu_custom_call.1} parent=43 // pred_check
          %p350 = pneg %p160
        $region62: #{tpu_custom_call.1} parent=43 // pred_check_branch
          %352 = sbr.rel (%p350) target = $region64
        $region63: #{tpu_custom_call.1} parent=43 // pred_region
          %354 = dma.done [#allocation13], 512
        $region64: #{tpu_custom_call.1} parent=43 // pred_fallthru
          _
        %s355 = sand.u32 %s56, 1
        %s356 = scalar_lea.sflag [#allocation7], %s355
        %s357 = sand.u32 %s56, 1
        %s358 = smul.addr %s357, 8
        %s359 = scalar_lea.vmem [#allocation6], %s358
        %p360 = pneg %p69
        %p361 = pneg %p66
        %s362 = sand.u32 %s27, 1
        %s363 = scalar_lea.sflag [#allocation10], %s362
        %s364 = sand.u32 %s84, 1
        %s365 = smul.addr %s364, 8
        %s366 = scalar_lea.vmem [#allocation9], %s365
        %p367 = pneg %p97
        %p368 = pneg %p94
        %p369 = pneg %p118
        %p370 = pneg %p115
        %p371 = pneg %p139
        %p372 = pneg %p136
        %p373 = pneg %p160
        %p374 = pneg %p157
        %p375 = pneg %p181
        %p376 = pneg %p178
        %p377 = pneg %p209
        %p378 = pneg %p206
        %s379 = sand.u32 %s196, 1
        %s380 = scalar_lea.sflag [#allocation8], %s379
        %s381 = sand.u32 %s196, 1
        %s382 = smul.addr %s381, 8
        %s383 = scalar_lea.vmem [#allocation15], %s382
        %p384 = scmp.eq.s32.totalorder %s34, 0
        // Predicated region
        $region65: #{tpu_custom_call.1} parent=43 // pred_check
          %p385 = pneg %p384
        $region66: #{tpu_custom_call.1} parent=43 // pred_check_branch
          %387 = sbr.rel (%p385) target = $region68
        $region67: #{tpu_custom_call.1} parent=43 // pred_region
          %v388 = vld [vmem:[%s324] sm:$0xff]
          %v389 = vld [vmem:[#allocation11] sm:$0xff]
          %v390 = vld [vmem:[#allocation11 + $0x8] sm:$0xff]
          %v391 = vld [vmem:[#allocation11 + $0x10] sm:$0xff]
          %v392 = vld [vmem:[#allocation11 + $0x18] sm:$0xff]
          %vm393 = vcmask 261120
          %v395 = vsel %vm393, %v388, 0
          %397 = vmatpush.msra.mxu0 0.0
          %398 = vmatpush.msra.mxu0 0.0
          %399 = vmatpush.msra.mxu0 0.0
          %400 = vmatpush.msra.mxu0 0.0
          %401 = vmatpush.msra.mxu0 0.0
          %402 = vmatpush.msra.mxu0 0.0
          %403 = vmatpush.msra.mxu0 0.0
          %404 = vmatpush.msra.mxu0 0.0
          %405 = vmatpush.msra.mxu0 0.0
          %406 = vmatpush.msra.mxu0 0.0
          %407 = vmatpush.msra.mxu0 0.0
          %408 = vmatpush.msra.mxu0 0.0
          %409 = vmatpush.msra.mxu0 %v392
          %410 = vmatpush.msra.mxu0 %v391
          %411 = vmatpush.msra.mxu0 %v390
          %412 = vmatpush.msra.mxu0 %v389
          %413 = vmatmul.f32.gmra.mxu0 %v395
          %v414 = vpop.f32.mrf.mxu0
          %v415 = vadd.f32 0.0, %v414
          %416 = vdwg.mxu0
          %v417 = vmul.f32 %v415, 0.35355338
          %418 = vst.msk [vmem:[#allocation2] sm:$0xff] %vm393, %v417
          %vm419 = vcmask 7168
          %420 = vst.msk [vmem:[#allocation3] sm:$0xff] %vm419, -inf
          %421 = vst.msk [vmem:[#allocation3 + $0x8] sm:$0xff] %vm419, -inf
          %422 = vst.msk [vmem:[#allocation3 + $0x10] sm:$0xff] %vm419, -inf
          %423 = vst.msk [vmem:[#allocation3 + $0x18] sm:$0xff] %vm419, -inf
          %424 = vst.msk [vmem:[#allocation4] sm:$0xff] %vm419, 0.0
          %425 = vst.msk [vmem:[#allocation4 + $0x8] sm:$0xff] %vm419, 0.0
          %426 = vst.msk [vmem:[#allocation4 + $0x10] sm:$0xff] %vm419, 0.0
          %427 = vst.msk [vmem:[#allocation4 + $0x18] sm:$0xff] %vm419, 0.0
          %vm428 = vcmask 64512
          %429 = vst.msk [vmem:[#allocation5] sm:$0xff] %vm428, 0.0
          %430 = vst.msk [vmem:[#allocation5 + $0x8] sm:$0xff] %vm428, 0.0
          %431 = vst.msk [vmem:[#allocation5 + $0x10] sm:$0xff] %vm428, 0.0
          %432 = vst.msk [vmem:[#allocation5 + $0x18] sm:$0xff] %vm428, 0.0
        $region68: #{tpu_custom_call.1} parent=43 // pred_fallthru
          _
        %s433 = smul.u32 %s33, 8
        %s434 = smul.u32 %s34, 8
        %s435 = sadd.s32 %s433, 7
        %p436 = scmp.le.s32.totalorder %s434, %s435
        // Predicated region
        $region69: #{tpu_custom_call.1} parent=43 // pred_check
          %p437 = pneg %p436
        $region70: #{tpu_custom_call.1} parent=43 // pred_check_branch
          %439 = sbr.rel (%p437) target = $region72
        $region71: #{tpu_custom_call.1} parent=43 // pred_region
          %v440 = vld [vmem:[%s334] sm:$0xff]
          %v441 = vld [vmem:[#allocation12] sm:$0xff]
          %v442 = vld [vmem:[#allocation12 + $0x8] sm:$0xff]
          %v443 = vld [vmem:[#allocation12 + $0x10] sm:$0xff]
          %v444 = vld [vmem:[#allocation12 + $0x18] sm:$0xff]
          %vm445 = vcmask 261120
          %v447 = vsel %vm445, %v440, 0
          %449 = vmatpush.msra.mxu0 0.0
          %450 = vmatpush.msra.mxu0 0.0
          %451 = vmatpush.msra.mxu0 0.0
          %452 = vmatpush.msra.mxu0 0.0
          %453 = vmatpush.msra.mxu0 0.0
          %454 = vmatpush.msra.mxu0 0.0
          %455 = vmatpush.msra.mxu0 0.0
          %456 = vmatpush.msra.mxu0 0.0
          %457 = vmatpush.msra.mxu0 0.0
          %458 = vmatpush.msra.mxu0 0.0
          %459 = vmatpush.msra.mxu0 0.0
          %460 = vmatpush.msra.mxu0 0.0
          %461 = vmatpush.msra.mxu0 %v444
          %462 = vmatpush.msra.mxu0 %v443
          %463 = vmatpush.msra.mxu0 %v442
          %464 = vmatpush.msra.mxu0 %v441
          %465 = vmatmul.f32.gmra.mxu0 %v447
          %v466 = vpop.f32.mrf.mxu0
          %v467 = vadd.f32 0.0, %v466
          %468 = vdwg.mxu0
          %v469 = vlaneseq
          %v470 = vshrl.u32 %v469, 7
          %v471 = vstv %s433
          %v472 = vadd.s32 %v471, %v470
          %v473 = vlaneseq
          %v474 = vand.u32 %v473, 127
          %v475 = vstv %s434
          %v476 = vadd.s32 %v475, %v474
          %vm477 = vcmp.le.s32.totalorder %v476, %v472
          %v478 = vld [vmem:[#allocation2] sm:$0xff]
          %vm479 = vcmask 64512
          %v481 = vsel %vm479, %v478, 0
          %v484 = vsel %vm479, %v467, 0
          %486 = vmatpush.xpose.msra.mxu0 0.0
          %487 = vmatpush.xpose.msra.mxu0 0.0
          %488 = vmatpush.xpose.msra.mxu0 0.0
          %489 = vmatpush.xpose.msra.mxu0 0.0
          %490 = vmatpush.xpose.msra.mxu0 0.0
          %491 = vmatpush.xpose.msra.mxu0 0.0
          %492 = vmatpush.xpose.msra.mxu0 0.0
          %493 = vmatpush.xpose.msra.mxu0 0.0
          %494 = vmatpush.xpose.msra.mxu0 0.0
          %495 = vmatpush.xpose.msra.mxu0 0.0
          %496 = vmatpush.xpose.msra.mxu0 0.0
          %497 = vmatpush.xpose.msra.mxu0 0.0
          %498 = vmatpush.xpose.msra.mxu0 0.0
          %499 = vmatpush.xpose.msra.mxu0 0.0
          %500 = vmatpush.xpose.msra.mxu0 0.0
          %501 = vmatpush.xpose.msra.mxu0 %v484
          %502 = vmatmul.f32.gmra.mxu0 %v481
          %v503 = vpop.f32.mrf.mxu0
          %v504 = vadd.f32 0.0, %v503
          %505 = vdwg.mxu0
          %v506 = vsel %vm477, %v504, -inf
          %v507 = vld [vmem:[#allocation3] sm:$0xff]
          %v508 = vsel %vm479, %v506, -inf
          %509 = vmax.xlane.f32.xlu0 %v508
          %v510 = vpop.xlane.xlu0 %509
          %v511 = vmax.f32 %v507, %v510
          %v512 = vsub.f32 %v507, %v511
          %v513 = vmul.f32 %v512, 1.442695
          %v514 = vpow.pop %v513
          %516 = vset.pattern.permute.xlu0 0
          %517 = vperm.xlu0 %516, %v511
          %v518 = vpop.permute.xlu0 %517
          %v520 = vsub.f32 %v506, %v518
          %v521 = vmul.f32 %v520, 1.442695
          %v522 = vpow.pop %v521
          %v523 = vld [vmem:[#allocation4] sm:$0xff]
          %v524 = vmul.f32 %v514, %v523
          %v525 = vsel %vm479, %v522, 0.0
          %526 = vadd.xlane.f32.xlu0 %v525
          %v527 = vpop.xlane.xlu0 %526
          %v528 = vadd.f32 %v524, %v527
          %vm529 = vcmask 7168
          %530 = vst.msk [vmem:[#allocation4] sm:$0xff] %vm529, %v528
          %v531 = vld [vmem:[#allocation5] sm:$0xff]
          %533 = vset.pattern.permute.xlu0 0
          %534 = vperm.xlu0 %533, %v514
          %v535 = vpop.permute.xlu0 %534
          %v537 = vmul.f32 %v535, %v531
          %538 = vrot.lane.b32.xlu0 %v467, 96
          %v539 = vpop.permute.xlu0 %538
          %v542 = vsel %vm479, %v522, 0
          %544 = vmatpush.msra.mxu0 0.0
          %545 = vmatpush.msra.mxu0 0.0
          %546 = vmatpush.msra.mxu0 0.0
          %547 = vmatpush.msra.mxu0 0.0
          %548 = vmatpush.msra.mxu0 0.0
          %549 = vmatpush.msra.mxu0 0.0
          %550 = vmatpush.msra.mxu0 0.0
          %551 = vmatpush.msra.mxu0 0.0
          %552 = vmatpush.msra.mxu0 0.0
          %553 = vmatpush.msra.mxu0 0.0
          %554 = vmatpush.msra.mxu0 0.0
          %555 = vmatpush.msra.mxu0 0.0
          %556 = vmatpush.msra.mxu0 0.0
          %557 = vmatpush.msra.mxu0 0.0
          %558 = vmatpush.msra.mxu0 0.0
          %559 = vmatpush.msra.mxu0 %v539
          %560 = vmatmul.f32.gmra.mxu0 %v542
          %v561 = vpop.f32.mrf.mxu0
          %v562 = vadd.f32 0.0, %v561
          %563 = vdwg.mxu0
          %v564 = vadd.f32 %v537, %v562
          %565 = vst.msk [vmem:[#allocation5] sm:$0xff] %vm479, %v564
          %566 = vst.msk [vmem:[#allocation3] sm:$0xff] %vm529, %v511
          %567 = vrot.lane.b32.xlu0 %v478, 120
          %v568 = vpop.permute.xlu0 %567
          %569 = vrot.lane.b32.xlu0 %v467, 120
          %v570 = vpop.permute.xlu0 %569
          %v571 = vsel %vm479, %v568, 0
          %v573 = vsel %vm479, %v570, 0
          %575 = vmatpush.xpose.msra.mxu0 0.0
          %576 = vmatpush.xpose.msra.mxu0 0.0
          %577 = vmatpush.xpose.msra.mxu0 0.0
          %578 = vmatpush.xpose.msra.mxu0 0.0
          %579 = vmatpush.xpose.msra.mxu0 0.0
          %580 = vmatpush.xpose.msra.mxu0 0.0
          %581 = vmatpush.xpose.msra.mxu0 0.0
          %582 = vmatpush.xpose.msra.mxu0 0.0
          %583 = vmatpush.xpose.msra.mxu0 0.0
          %584 = vmatpush.xpose.msra.mxu0 0.0
          %585 = vmatpush.xpose.msra.mxu0 0.0
          %586 = vmatpush.xpose.msra.mxu0 0.0
          %587 = vmatpush.xpose.msra.mxu0 0.0
          %588 = vmatpush.xpose.msra.mxu0 0.0
          %589 = vmatpush.xpose.msra.mxu0 0.0
          %590 = vmatpush.xpose.msra.mxu0 %v573
          %591 = vmatmul.f32.gmra.mxu0 %v571
          %v592 = vpop.f32.mrf.mxu0
          %v593 = vadd.f32 0.0, %v592
          %594 = vdwg.mxu0
          %v595 = vsel %vm477, %v593, -inf
          %s596 = scalar_lea.vmem [#allocation3], 8
          %v597 = vld [vmem:[%s596] sm:$0xff]
          %v598 = vsel %vm479, %v595, -inf
          %599 = vmax.xlane.f32.xlu0 %v598
          %v600 = vpop.xlane.xlu0 %599
          %v601 = vmax.f32 %v597, %v600
          %v602 = vsub.f32 %v597, %v601
          %v603 = vmul.f32 %v602, 1.442695
          %v604 = vpow.pop %v603
          %606 = vset.pattern.permute.xlu0 0
          %607 = vperm.xlu0 %606, %v601
          %v608 = vpop.permute.xlu0 %607
          %v610 = vsub.f32 %v595, %v608
          %v611 = vmul.f32 %v610, 1.442695
          %v612 = vpow.pop %v611
          %s613 = scalar_lea.vmem [#allocation4], 8
          %v614 = vld [vmem:[%s613] sm:$0xff]
          %v615 = vmul.f32 %v604, %v614
          %v616 = vsel %vm479, %v612, 0.0
          %617 = vadd.xlane.f32.xlu0 %v616
          %v618 = vpop.xlane.xlu0 %617
          %v619 = vadd.f32 %v615, %v618
          %620 = vst.msk [vmem:[%s613] sm:$0xff] %vm529, %v619
          %s621 = scalar_lea.vmem [#allocation5], 8
          %v622 = vld [vmem:[%s621] sm:$0xff]
          %624 = vset.pattern.permute.xlu0 0
          %625 = vperm.xlu0 %624, %v604
          %v626 = vpop.permute.xlu0 %625
          %v628 = vmul.f32 %v626, %v622
          %629 = vrot.lane.b32.xlu0 %v467, 88
          %v630 = vpop.permute.xlu0 %629
          %v633 = vsel %vm479, %v612, 0
          %635 = vmatpush.msra.mxu0 0.0
          %636 = vmatpush.msra.mxu0 0.0
          %637 = vmatpush.msra.mxu0 0.0
          %638 = vmatpush.msra.mxu0 0.0
          %639 = vmatpush.msra.mxu0 0.0
          %640 = vmatpush.msra.mxu0 0.0
          %641 = vmatpush.msra.mxu0 0.0
          %642 = vmatpush.msra.mxu0 0.0
          %643 = vmatpush.msra.mxu0 0.0
          %644 = vmatpush.msra.mxu0 0.0
          %645 = vmatpush.msra.mxu0 0.0
          %646 = vmatpush.msra.mxu0 0.0
          %647 = vmatpush.msra.mxu0 0.0
          %648 = vmatpush.msra.mxu0 0.0
          %649 = vmatpush.msra.mxu0 0.0
          %650 = vmatpush.msra.mxu0 %v630
          %651 = vmatmul.f32.gmra.mxu0 %v633
          %v652 = vpop.f32.mrf.mxu0
          %v653 = vadd.f32 0.0, %v652
          %654 = vdwg.mxu0
          %v655 = vadd.f32 %v628, %v653
          %656 = vst.msk [vmem:[%s621] sm:$0xff] %vm479, %v655
          %657 = vst.msk [vmem:[%s596] sm:$0xff] %vm529, %v601
          %658 = vrot.lane.b32.xlu0 %v478, 112
          %v659 = vpop.permute.xlu0 %658
          %660 = vrot.lane.b32.xlu0 %v467, 112
          %v661 = vpop.permute.xlu0 %660
          %v662 = vsel %vm479, %v659, 0
          %v664 = vsel %vm479, %v661, 0
          %666 = vmatpush.xpose.msra.mxu0 0.0
          %667 = vmatpush.xpose.msra.mxu0 0.0
          %668 = vmatpush.xpose.msra.mxu0 0.0
          %669 = vmatpush.xpose.msra.mxu0 0.0
          %670 = vmatpush.xpose.msra.mxu0 0.0
          %671 = vmatpush.xpose.msra.mxu0 0.0
          %672 = vmatpush.xpose.msra.mxu0 0.0
          %673 = vmatpush.xpose.msra.mxu0 0.0
          %674 = vmatpush.xpose.msra.mxu0 0.0
          %675 = vmatpush.xpose.msra.mxu0 0.0
          %676 = vmatpush.xpose.msra.mxu0 0.0
          %677 = vmatpush.xpose.msra.mxu0 0.0
          %678 = vmatpush.xpose.msra.mxu0 0.0
          %679 = vmatpush.xpose.msra.mxu0 0.0
          %680 = vmatpush.xpose.msra.mxu0 0.0
          %681 = vmatpush.xpose.msra.mxu0 %v664
          %682 = vmatmul.f32.gmra.mxu0 %v662
          %v683 = vpop.f32.mrf.mxu0
          %v684 = vadd.f32 0.0, %v683
          %685 = vdwg.mxu0
          %v686 = vsel %vm477, %v684, -inf
          %s687 = scalar_lea.vmem [#allocation3], 16
          %v688 = vld [vmem:[%s687] sm:$0xff]
          %v689 = vsel %vm479, %v686, -inf
          %690 = vmax.xlane.f32.xlu0 %v689
          %v691 = vpop.xlane.xlu0 %690
          %v692 = vmax.f32 %v688, %v691
          %v693 = vsub.f32 %v688, %v692
          %v694 = vmul.f32 %v693, 1.442695
          %v695 = vpow.pop %v694
          %697 = vset.pattern.permute.xlu0 0
          %698 = vperm.xlu0 %697, %v692
          %v699 = vpop.permute.xlu0 %698
          %v701 = vsub.f32 %v686, %v699
          %v702 = vmul.f32 %v701, 1.442695
          %v703 = vpow.pop %v702
          %s704 = scalar_lea.vmem [#allocation4], 16
          %v705 = vld [vmem:[%s704] sm:$0xff]
          %v706 = vmul.f32 %v695, %v705
          %v707 = vsel %vm479, %v703, 0.0
          %708 = vadd.xlane.f32.xlu0 %v707
          %v709 = vpop.xlane.xlu0 %708
          %v710 = vadd.f32 %v706, %v709
          %711 = vst.msk [vmem:[%s704] sm:$0xff] %vm529, %v710
          %s712 = scalar_lea.vmem [#allocation5], 16
          %v713 = vld [vmem:[%s712] sm:$0xff]
          %715 = vset.pattern.permute.xlu0 0
          %716 = vperm.xlu0 %715, %v695
          %v717 = vpop.permute.xlu0 %716
          %v719 = vmul.f32 %v717, %v713
          %720 = vrot.lane.b32.xlu0 %v467, 80
          %v721 = vpop.permute.xlu0 %720
          %v724 = vsel %vm479, %v703, 0
          %726 = vmatpush.msra.mxu0 0.0
          %727 = vmatpush.msra.mxu0 0.0
          %728 = vmatpush.msra.mxu0 0.0
          %729 = vmatpush.msra.mxu0 0.0
          %730 = vmatpush.msra.mxu0 0.0
          %731 = vmatpush.msra.mxu0 0.0
          %732 = vmatpush.msra.mxu0 0.0
          %733 = vmatpush.msra.mxu0 0.0
          %734 = vmatpush.msra.mxu0 0.0
          %735 = vmatpush.msra.mxu0 0.0
          %736 = vmatpush.msra.mxu0 0.0
          %737 = vmatpush.msra.mxu0 0.0
          %738 = vmatpush.msra.mxu0 0.0
          %739 = vmatpush.msra.mxu0 0.0
          %740 = vmatpush.msra.mxu0 0.0
          %741 = vmatpush.msra.mxu0 %v721
          %742 = vmatmul.f32.gmra.mxu0 %v724
          %v743 = vpop.f32.mrf.mxu0
          %v744 = vadd.f32 0.0, %v743
          %745 = vdwg.mxu0
          %v746 = vadd.f32 %v719, %v744
          %747 = vst.msk [vmem:[%s712] sm:$0xff] %vm479, %v746
          %748 = vst.msk [vmem:[%s687] sm:$0xff] %vm529, %v692
          %749 = vrot.lane.b32.xlu0 %v478, 104
          %v750 = vpop.permute.xlu0 %749
          %751 = vrot.lane.b32.xlu0 %v467, 104
          %v752 = vpop.permute.xlu0 %751
          %v753 = vsel %vm479, %v750, 0
          %v755 = vsel %vm479, %v752, 0
          %757 = vmatpush.xpose.msra.mxu0 0.0
          %758 = vmatpush.xpose.msra.mxu0 0.0
          %759 = vmatpush.xpose.msra.mxu0 0.0
          %760 = vmatpush.xpose.msra.mxu0 0.0
          %761 = vmatpush.xpose.msra.mxu0 0.0
          %762 = vmatpush.xpose.msra.mxu0 0.0
          %763 = vmatpush.xpose.msra.mxu0 0.0
          %764 = vmatpush.xpose.msra.mxu0 0.0
          %765 = vmatpush.xpose.msra.mxu0 0.0
          %766 = vmatpush.xpose.msra.mxu0 0.0
          %767 = vmatpush.xpose.msra.mxu0 0.0
          %768 = vmatpush.xpose.msra.mxu0 0.0
          %769 = vmatpush.xpose.msra.mxu0 0.0
          %770 = vmatpush.xpose.msra.mxu0 0.0
          %771 = vmatpush.xpose.msra.mxu0 0.0
          %772 = vmatpush.xpose.msra.mxu0 %v755
          %773 = vmatmul.f32.gmra.mxu0 %v753
          %v774 = vpop.f32.mrf.mxu0
          %v775 = vadd.f32 0.0, %v774
          %776 = vdwg.mxu0
          %v777 = vsel %vm477, %v775, -inf
          %s778 = scalar_lea.vmem [#allocation3], 24
          %v779 = vld [vmem:[%s778] sm:$0xff]
          %v780 = vsel %vm479, %v777, -inf
          %781 = vmax.xlane.f32.xlu0 %v780
          %v782 = vpop.xlane.xlu0 %781
          %v783 = vmax.f32 %v779, %v782
          %v784 = vsub.f32 %v779, %v783
          %v785 = vmul.f32 %v784, 1.442695
          %v786 = vpow.pop %v785
          %788 = vset.pattern.permute.xlu0 0
          %789 = vperm.xlu0 %788, %v783
          %v790 = vpop.permute.xlu0 %789
          %v792 = vsub.f32 %v777, %v790
          %v793 = vmul.f32 %v792, 1.442695
          %v794 = vpow.pop %v793
          %s795 = scalar_lea.vmem [#allocation4], 24
          %v796 = vld [vmem:[%s795] sm:$0xff]
          %v797 = vmul.f32 %v786, %v796
          %v798 = vsel %vm479, %v794, 0.0
          %799 = vadd.xlane.f32.xlu0 %v798
          %v800 = vpop.xlane.xlu0 %799
          %v801 = vadd.f32 %v797, %v800
          %802 = vst.msk [vmem:[%s795] sm:$0xff] %vm529, %v801
          %s803 = scalar_lea.vmem [#allocation5], 24
          %v804 = vld [vmem:[%s803] sm:$0xff]
          %806 = vset.pattern.permute.xlu0 0
          %807 = vperm.xlu0 %806, %v786
          %v808 = vpop.permute.xlu0 %807
          %v810 = vmul.f32 %v808, %v804
          %811 = vrot.lane.b32.xlu0 %v467, 72
          %v812 = vpop.permute.xlu0 %811
          %v815 = vsel %vm479, %v794, 0
          %817 = vmatpush.msra.mxu0 0.0
          %818 = vmatpush.msra.mxu0 0.0
          %819 = vmatpush.msra.mxu0 0.0
          %820 = vmatpush.msra.mxu0 0.0
          %821 = vmatpush.msra.mxu0 0.0
          %822 = vmatpush.msra.mxu0 0.0
          %823 = vmatpush.msra.mxu0 0.0
          %824 = vmatpush.msra.mxu0 0.0
          %825 = vmatpush.msra.mxu0 0.0
          %826 = vmatpush.msra.mxu0 0.0
          %827 = vmatpush.msra.mxu0 0.0
          %828 = vmatpush.msra.mxu0 0.0
          %829 = vmatpush.msra.mxu0 0.0
          %830 = vmatpush.msra.mxu0 0.0
          %831 = vmatpush.msra.mxu0 0.0
          %832 = vmatpush.msra.mxu0 %v812
          %833 = vmatmul.f32.gmra.mxu0 %v815
          %v834 = vpop.f32.mrf.mxu0
          %v835 = vadd.f32 0.0, %v834
          %836 = vdwg.mxu0
          %v837 = vadd.f32 %v810, %v835
          %838 = vst.msk [vmem:[%s803] sm:$0xff] %vm479, %v837
          %839 = vst.msk [vmem:[%s778] sm:$0xff] %vm529, %v783
        $region72: #{tpu_custom_call.1} parent=43 // pred_fallthru
          _
        // Predicated region
        $region73: #{tpu_custom_call.1} parent=43 // pred_check
          %p840 = pneg %p384
        $region74: #{tpu_custom_call.1} parent=43 // pred_check_branch
          %842 = sbr.rel (%p840) target = $region76
        $region75: #{tpu_custom_call.1} parent=43 // pred_region
          %v843 = vld [vmem:[#allocation14] sm:$0xff]
          %v844 = vld [vmem:[#allocation14 + $0x8] sm:$0xff]
          %v845 = vld [vmem:[#allocation14 + $0x10] sm:$0xff]
          %v846 = vld [vmem:[#allocation14 + $0x18] sm:$0xff]
          %v847 = vld [vmem:[#allocation5] sm:$0xff]
          %v848 = vld [vmem:[#allocation4] sm:$0xff]
          %v849 = vrcp.pop %v848
          %851 = vset.pattern.permute.xlu0 0
          %852 = vperm.xlu0 %851, %v849
          %v853 = vpop.permute.xlu0 %852
          %v855 = vmul.f32 %v847, %v853
          %s856 = scalar_lea.vmem [#allocation5], 8
          %v857 = vld [vmem:[%s856] sm:$0xff]
          %s858 = scalar_lea.vmem [#allocation4], 8
          %v859 = vld [vmem:[%s858] sm:$0xff]
          %v860 = vrcp.pop %v859
          %862 = vset.pattern.permute.xlu0 0
          %863 = vperm.xlu0 %862, %v860
          %v864 = vpop.permute.xlu0 %863
          %v866 = vmul.f32 %v857, %v864
          %vm867 = vcmask 64512
          %v869 = vsel %vm867, %v866, 0
          %871 = vmatpush.msra.mxu0 0.0
          %872 = vmatpush.msra.mxu0 0.0
          %873 = vmatpush.msra.mxu0 0.0
          %874 = vmatpush.msra.mxu0 0.0
          %875 = vmatpush.msra.mxu0 0.0
          %876 = vmatpush.msra.mxu0 0.0
          %877 = vmatpush.msra.mxu0 0.0
          %878 = vmatpush.msra.mxu0 0.0
          %879 = vmatpush.msra.mxu0 0.0
          %880 = vmatpush.msra.mxu0 0.0
          %881 = vmatpush.msra.mxu0 0.0
          %882 = vmatpush.msra.mxu0 0.0
          %883 = vmatpush.msra.mxu0 0.0
          %884 = vmatpush.msra.mxu0 0.0
          %885 = vmatpush.msra.mxu0 0.0
          %886 = vmatpush.msra.mxu0 %v844
          %887 = vmatmul.f32.gmra.mxu0 %v869
          %v888 = vpop.f32.mrf.mxu0
          %v889 = vadd.f32 0.0, %v888
          %890 = vdwg.mxu0
          %v892 = vsel %vm867, %v855, 0
          %894 = vmatpush.msra.mxu0 0.0
          %895 = vmatpush.msra.mxu0 0.0
          %896 = vmatpush.msra.mxu0 0.0
          %897 = vmatpush.msra.mxu0 0.0
          %898 = vmatpush.msra.mxu0 0.0
          %899 = vmatpush.msra.mxu0 0.0
          %900 = vmatpush.msra.mxu0 0.0
          %901 = vmatpush.msra.mxu0 0.0
          %902 = vmatpush.msra.mxu0 0.0
          %903 = vmatpush.msra.mxu0 0.0
          %904 = vmatpush.msra.mxu0 0.0
          %905 = vmatpush.msra.mxu0 0.0
          %906 = vmatpush.msra.mxu0 0.0
          %907 = vmatpush.msra.mxu0 0.0
          %908 = vmatpush.msra.mxu0 0.0
          %909 = vmatpush.msra.mxu0 %v843
          %910 = vmatmul.f32.gmra.mxu0 %v892
          %v911 = vpop.f32.mrf.mxu0
          %v912 = vadd.f32 %v889, %v911
          %913 = vdwg.mxu0
          %s914 = scalar_lea.vmem [#allocation5], 16
          %v915 = vld [vmem:[%s914] sm:$0xff]
          %s916 = scalar_lea.vmem [#allocation4], 16
          %v917 = vld [vmem:[%s916] sm:$0xff]
          %v918 = vrcp.pop %v917
          %920 = vset.pattern.permute.xlu0 0
          %921 = vperm.xlu0 %920, %v918
          %v922 = vpop.permute.xlu0 %921
          %v924 = vmul.f32 %v915, %v922
          %v926 = vsel %vm867, %v924, 0
          %928 = vmatpush.msra.mxu0 0.0
          %929 = vmatpush.msra.mxu0 0.0
          %930 = vmatpush.msra.mxu0 0.0
          %931 = vmatpush.msra.mxu0 0.0
          %932 = vmatpush.msra.mxu0 0.0
          %933 = vmatpush.msra.mxu0 0.0
          %934 = vmatpush.msra.mxu0 0.0
          %935 = vmatpush.msra.mxu0 0.0
          %936 = vmatpush.msra.mxu0 0.0
          %937 = vmatpush.msra.mxu0 0.0
          %938 = vmatpush.msra.mxu0 0.0
          %939 = vmatpush.msra.mxu0 0.0
          %940 = vmatpush.msra.mxu0 0.0
          %941 = vmatpush.msra.mxu0 0.0
          %942 = vmatpush.msra.mxu0 0.0
          %943 = vmatpush.msra.mxu0 %v845
          %944 = vmatmul.f32.gmra.mxu0 %v926
          %v945 = vpop.f32.mrf.mxu0
          %v946 = vadd.f32 0.0, %v945
          %947 = vdwg.mxu0
          %v948 = vadd.f32 %v912, %v946
          %s949 = scalar_lea.vmem [#allocation5], 24
          %v950 = vld [vmem:[%s949] sm:$0xff]
          %s951 = scalar_lea.vmem [#allocation4], 24
          %v952 = vld [vmem:[%s951] sm:$0xff]
          %v953 = vrcp.pop %v952
          %955 = vset.pattern.permute.xlu0 0
          %956 = vperm.xlu0 %955, %v953
          %v957 = vpop.permute.xlu0 %956
          %v959 = vmul.f32 %v950, %v957
          %v961 = vsel %vm867, %v959, 0
          %963 = vmatpush.msra.mxu0 0.0
          %964 = vmatpush.msra.mxu0 0.0
          %965 = vmatpush.msra.mxu0 0.0
          %966 = vmatpush.msra.mxu0 0.0
          %967 = vmatpush.msra.mxu0 0.0
          %968 = vmatpush.msra.mxu0 0.0
          %969 = vmatpush.msra.mxu0 0.0
          %970 = vmatpush.msra.mxu0 0.0
          %971 = vmatpush.msra.mxu0 0.0
          %972 = vmatpush.msra.mxu0 0.0
          %973 = vmatpush.msra.mxu0 0.0
          %974 = vmatpush.msra.mxu0 0.0
          %975 = vmatpush.msra.mxu0 0.0
          %976 = vmatpush.msra.mxu0 0.0
          %977 = vmatpush.msra.mxu0 0.0
          %978 = vmatpush.msra.mxu0 %v846
          %979 = vmatmul.f32.gmra.mxu0 %v961
          %v980 = vpop.f32.mrf.mxu0
          %v981 = vadd.f32 0.0, %v980
          %982 = vdwg.mxu0
          %v983 = vadd.f32 %v948, %v981
          %v984 = vld [vmem:[%s5] sm:$0x1]
          %v986 = vperm.slane %v984, 0
          %v988 = vadd.f32 %v983, %v986
          %vm989 = vcmask 261120
          %990 = vst.msk [vmem:[%s383] sm:$0xff] %vm989, %v988
        $region76: #{tpu_custom_call.1} parent=43 // pred_fallthru
          _
        %s991 = sand.u32 %s196, 1
        %s992 = scalar_lea.sflag [#allocation8], %s991
        %s993 = sand.u32 %s196, 1
        %s994 = smul.addr %s993, 8
        %s995 = scalar_lea.vmem [#allocation15], %s994
        // Predicated region
        $region77: #{tpu_custom_call.1} parent=43 // pred_check
          %p996 = pneg %p206
        $region78: #{tpu_custom_call.1} parent=43 // pred_check_branch
          %998 = sbr.rel (%p996) target = $region80
        $region79: #{tpu_custom_call.1} parent=43 // pred_region
          %1000 = vsyncadd %s992, 0
          %s1001 = sadd.s32 %s33, %s32
          %s1002 = smul.addr %s1001, 8
          %s1003 = scalar_lea.hbm %s6, %s1002
          %s1005 = sshll.u32 %s995, 4
          %s1006 = int_to_ptr.vmem [resolvable:$true] %s1005
          %s1007 = sshll.u32 %s1003, 4
          %s1008 = int_to_ptr.hbm [resolvable:$true] %s1007
          %1010 = dma.vmem_to_hbm [thread:$0]  %s1006, 128, %s1008, %s992
        $region80: #{tpu_custom_call.1} parent=43 // pred_fallthru
          _
      $region44: #{tpu_custom_call.1} parent=5 // pred_fallthru
        _
      %p1011 = scmp.le.s32.totalorder 2, %s22
      // Predicated region
      $region81: #{tpu_custom_call.1} parent=5 // pred_check
        %p1012 = pneg %p1011
      $region82: #{tpu_custom_call.1} parent=5 // pred_check_branch
        %1014 = sbr.rel (%p1012) target = $region84
      $region83: #{tpu_custom_call.1} parent=5 // pred_region
        %s1015 = ssub.s32 %s22, 2
        // Predicated region
        $region85: #{tpu_custom_call.1} parent=83 // pred_check
          %p1016 = pneg %p212
        $region86: #{tpu_custom_call.1} parent=83 // pred_check_branch
          %1018 = sbr.rel (%p1016) target = $region88
        $region87: #{tpu_custom_call.1} parent=83 // pred_region
          %s1019 = sand.u32 %s197, 1
          %s1020 = scalar_lea.sflag [#allocation8], %s1019
          %s1021 = sand.u32 %s197, 1
          %s1022 = smul.addr %s1021, 8
          %s1023 = scalar_lea.vmem [#allocation15], %s1022
          %1025 = dma.done %s1020, 128
        $region88: #{tpu_custom_call.1} parent=83 // pred_fallthru
          _
      $region84: #{tpu_custom_call.1} parent=5 // pred_fallthru
        _
    $region6: #{tpu_custom_call.1} parent=1 // loop_footer
      %s26 = sadd.s32 1, %s22
    $region7: #{tpu_custom_call.1} parent=1 // loop_footer_branch
      %21 = sbr.rel target = $region3
    $region8: #{tpu_custom_call.1} parent=1 // loop_exit
      _
    %1026 = vsyncpa [#allocation7], 1
    %s1027 = scalar_lea.sflag [#allocation7], 1
    %1028 = vsyncpa %s1027, 1
    %1029 = vsyncpa [#allocation10], 1
    %s1030 = scalar_lea.sflag [#allocation10], 1
    %1031 = vsyncpa %s1030, 1
    %1032 = vsyncpa [#allocation13], 1
    %1033 = vsyncpa [#allocation8], 1
    %s1034 = scalar_lea.sflag [#allocation8], 1
    %1035 = vsyncpa %s1034, 1

</llo_original>
